<compile_context>
chip_gen: v7x
topology: tpu7x:2x2x1
jax: 0.10.0
libtpu: 0.0.40
codegen_flags: <defaults>
</compile_context>

<pallas_src>
import functools
import numpy as np
import jax
import jax.numpy as jnp
from jax import lax
from jax.experimental import pallas as pl
from jax.experimental.pallas import tpu as pltpu

LN_EPS = 1e-5  # torch.nn.LayerNorm default


def positional_encoding(max_seq_len, dim, n=10000):
    pos = np.arange(max_seq_len)[:, None].astype(np.float64)
    i = np.arange(dim // 2)[None, :].astype(np.float64)
    angle = pos / (n ** (2.0 * i / dim))
    pe = np.zeros((max_seq_len, dim), dtype=np.float64)
    pe[:, 0::2] = np.sin(angle)
    pe[:, 1::2] = np.cos(angle)
    return pe


# ----------------------------- fused layer kernel ----------------------------

def _layer_kernel(x_ref, wq_ref, wk_ref, wv_ref, wo_ref, bo_ref,
                  g1_ref, be1_ref, w1_ref, b1_ref, w2_ref, b2_ref,
                  g2_ref, be2_ref, o_ref, *, batch, seq, heads, head_dim, scale):
    """Whole TransformerBlock on a (B*S, E) slab:
    QKV -> per-(batch,head) softmax attention -> buggy reshape -> fc_out
    -> residual + LN1 -> FFN(ReLU) -> residual + LN2."""
    x = x_ref[...]                                                      # (B*S, E)

    # QKV projections on the full slab; softmax scale folded into Q once.
    q = jnp.dot(x, wq_ref[...], preferred_element_type=jnp.float32) * scale
    k = jnp.dot(x, wk_ref[...], preferred_element_type=jnp.float32)
    v = jnp.dot(x, wv_ref[...], preferred_element_type=jnp.float32)

    # Per-(batch, head) attention, entirely in registers/VMEM (no HBM trips).
    pieces = []  # (1, head_dim) rows in flat (b, h, s) order
    for b in range(batch):                                              # static unroll
        r0 = b * seq
        for h in range(heads):                                          # static unroll
            c0 = h * head_dim
            qh = q[r0:r0 + seq, c0:c0 + head_dim]                       # (S, Hd)
            kh = k[r0:r0 + seq, c0:c0 + head_dim]
            vh = v[r0:r0 + seq, c0:c0 + head_dim]
            # qh @ kh.T without explicit transpose (contract last dims).
            s = lax.dot_general(qh, kh, (((1,), (1,)), ((), ())),
                                preferred_element_type=jnp.float32)     # (S, S)
            s = s - jnp.max(s, axis=-1, keepdims=True)
            p = jnp.exp(s)
            inv = pl.reciprocal(jnp.sum(p, axis=-1, keepdims=True), approx=True)
            p = p * inv
            oh = jnp.dot(p, vh, preferred_element_type=jnp.float32)     # (S, Hd)
            for si in range(seq):
                pieces.append(oh[si:si + 1, :])

    # Reproduce PyTorch's buggy `.reshape(N, S, E)` of the (N, H, S, Hd) tensor:
    # a row-major flatten.  Each output row is exactly E//Hd == heads contiguous
    # (1, Hd) pieces of the flat (b, h, s, d) stream -> build it with concats and
    # keep the result lane-dense as a (B*S, E) value.
    rows = [jnp.concatenate(pieces[i * heads:(i + 1) * heads], axis=1)
            for i in range(batch * seq)]
    attn = jnp.concatenate(rows, axis=0)                                # (B*S, E)

    # fc_out + residual + LayerNorm1
    out = jnp.dot(attn, wo_ref[...], preferred_element_type=jnp.float32) + bo_ref[...]
    x1 = x + out
    mu = jnp.mean(x1, axis=-1, keepdims=True)
    var = jnp.mean((x1 - mu) ** 2, axis=-1, keepdims=True)
    xn = (x1 - mu) * lax.rsqrt(var + LN_EPS) * g1_ref[...] + be1_ref[...]

    # FFN(ReLU) + residual + LayerNorm2
    hdn = jnp.dot(xn, w1_ref[...], preferred_element_type=jnp.float32) + b1_ref[...]
    hdn = jnp.maximum(hdn, 0.0)
    ff = jnp.dot(hdn, w2_ref[...], preferred_element_type=jnp.float32) + b2_ref[...]
    x2 = xn + ff
    mu2 = jnp.mean(x2, axis=-1, keepdims=True)
    var2 = jnp.mean((x2 - mu2) ** 2, axis=-1, keepdims=True)
    o_ref[...] = (x2 - mu2) * lax.rsqrt(var2 + LN_EPS) * g2_ref[...] + be2_ref[...]


# ------------------------------ wrappers --------------------------------------

def transformer_block(x, p, heads):
    B, S, E = x.shape
    Hd = E // heads
    F = p["w1"].shape[1]
    scale = 1.0 / (E ** 0.5)
    BS = B * S

    x2d = x.reshape(BS, E)   # fold batch into the matmul M dimension (free, in XLA)

    # Advisory cost for XLA scheduling around the L sequential layer calls.
    flops = (3 * 2 * BS * E * E            # QKV
             + B * heads * 4 * S * S * Hd  # scores + P@V
             + 2 * BS * E * E              # fc_out
             + 2 * 2 * BS * E * F)         # FFN
    bytes_accessed = 4 * (2 * BS * E + 4 * E * E + 2 * E * F + 6 * E + F)
    cost = pl.CostEstimate(flops=flops,
                           transcendentals=B * heads * S * S,
                           bytes_accessed=bytes_accessed)

    def full(shape):
        return pl.BlockSpec(shape, lambda i: (0,) * len(shape))

    y2d = pl.pallas_call(
        functools.partial(_layer_kernel, batch=B, seq=S, heads=heads,
                          head_dim=Hd, scale=scale),
        out_shape=jax.ShapeDtypeStruct((BS, E), jnp.float32),
        grid=(1,),
        in_specs=[
            full((BS, E)),                       # x
            full((E, E)), full((E, E)), full((E, E)),   # wq, wk, wv
            full((E, E)), full((1, E)),          # wo, bo
            full((1, E)), full((1, E)),          # g1, be1
            full((E, F)), full((1, F)),          # w1, b1
            full((F, E)), full((1, E)),          # w2, b2
            full((1, E)), full((1, E)),          # g2, be2
        ],
        out_specs=full((BS, E)),
        compiler_params=pltpu.CompilerParams(dimension_semantics=("arbitrary",)),
        cost_estimate=cost,
    )(x2d, p["wq"], p["wk"], p["wv"], p["wo"], p["bo"], p["g1"], p["be1"],
      p["w1"], p["b1"], p["w2"], p["b2"], p["g2"], p["be2"])
    return y2d.reshape(B, S, E)


def encoder_forward(tokens, emb_table, pe, layer_params, heads):
    B, S = tokens.shape
    # Embedding lookup (glue gather) + the reference PE quirk: add pe[batch_size]
    # to every position.  Dropout == identity (eval mode).
    x = jnp.take(emb_table, tokens, axis=0) + pe[B][None, None, :]
    for p in layer_params:
        x = transformer_block(x, p, heads)
    return x


# ------------------------- pure-JAX reference ---------------------------------

def _layernorm_ref(x, g, b):
    mu = jnp.mean(x, axis=-1, keepdims=True)
    var = jnp.mean((x - mu) ** 2, axis=-1, keepdims=True)
    return (x - mu) / jnp.sqrt(var + LN_EPS) * g + b


def reference_forward(tokens, emb_table, pe, layer_params, heads):
    B, S = tokens.shape
    E = emb_table.shape[1]
    Hd = E // heads
    x = jnp.take(emb_table, tokens, axis=0) + pe[B][None, None, :]
    for p in layer_params:
        q = x @ p["wq"]; k = x @ p["wk"]; v = x @ p["wv"]
        qh = q.reshape(B, S, heads, Hd).transpose(0, 2, 1, 3)
        kh = k.reshape(B, S, heads, Hd).transpose(0, 2, 3, 1)
        vh = v.reshape(B, S, heads, Hd).transpose(0, 2, 1, 3)
        s = jax.nn.softmax(jnp.matmul(qh, kh) / (E ** 0.5), axis=-1)
        a = jnp.matmul(s, vh).reshape(B, S, E)          # same buggy reshape
        x1 = x + (a @ p["wo"] + p["bo"][0])
        xn = _layernorm_ref(x1, p["g1"][0], p["be1"][0])
        ff = jnp.maximum(xn @ p["w1"] + p["b1"][0], 0.0) @ p["w2"] + p["b2"][0]
        x = _layernorm_ref(xn + ff, p["g2"][0], p["be2"][0])
    return x


# ------------------------------- params ----------------------------------------

def make_layer_params(key, E, F):
    ks = jax.random.split(key, 8)
    sc = 0.05
    return dict(
        wq=jax.random.normal(ks[0], (E, E), jnp.float32) * sc,
        wk=jax.random.normal(ks[1], (E, E), jnp.float32) * sc,
        wv=jax.random.normal(ks[2], (E, E), jnp.float32) * sc,
        wo=jax.random.normal(ks[3], (E, E), jnp.float32) * sc,
        bo=jax.random.normal(ks[4], (1, E), jnp.float32) * sc,
        g1=jnp.ones((1, E), jnp.float32),
        be1=jnp.zeros((1, E), jnp.float32),
        w1=jax.random.normal(ks[5], (E, F), jnp.float32) * sc,
        b1=jax.random.normal(ks[6], (1, F), jnp.float32) * sc,
        w2=jax.random.normal(ks[7], (F, E), jnp.float32) * sc,
        b2=jnp.zeros((1, E), jnp.float32),
        g2=jnp.ones((1, E), jnp.float32),
        be2=jnp.zeros((1, E), jnp.float32),
    )


if __name__ == "__main__":
    vocab, E, H, F, L = 50, 32, 4, 64, 2
    B, S, max_seq_len = 2, 8, 16

    key = jax.random.PRNGKey(0)
    k_emb, k_tok, *k_layers = jax.random.split(key, 2 + L)

    emb_table = jax.random.normal(k_emb, (vocab, E), jnp.float32) * 0.1
    pe = jnp.asarray(positional_encoding(max_seq_len, E, n=10000), dtype=jnp.float32)
    layer_params = [make_layer_params(k, E, F) for k in k_layers]
    tokens = jax.random.randint(k_tok, (B, S), 0, vocab, dtype=jnp.int32)

    out = encoder_forward(tokens, emb_table, pe, layer_params, H)
    out = jax.block_until_ready(out)

    ref = reference_forward(tokens, emb_table, pe, layer_params, H)
    assert out.shape == (B, S, E)
    # Tolerance relaxed slightly (2e-3) to accommodate the EUP approximate
    # reciprocal in the softmax denominator; everything else is exact f32.
    np.testing.assert_allclose(np.asarray(out), np.asarray(ref), rtol=2e-3, atol=2e-3)
    print("KERNEL_OK")
</pallas_src>

<mosaic_0001>
module attributes {stable_mosaic.version = 11 : i64} {
  func.func @_layer_kernel(%arg0: i32, %arg1: memref<16x32xf32, #tpu.memory_space<vmem>>, %arg2: memref<32x32xf32, #tpu.memory_space<vmem>>, %arg3: memref<32x32xf32, #tpu.memory_space<vmem>>, %arg4: memref<32x32xf32, #tpu.memory_space<vmem>>, %arg5: memref<32x32xf32, #tpu.memory_space<vmem>>, %arg6: memref<1x32xf32, #tpu.memory_space<vmem>>, %arg7: memref<1x32xf32, #tpu.memory_space<vmem>>, %arg8: memref<1x32xf32, #tpu.memory_space<vmem>>, %arg9: memref<32x64xf32, #tpu.memory_space<vmem>>, %arg10: memref<1x64xf32, #tpu.memory_space<vmem>>, %arg11: memref<64x32xf32, #tpu.memory_space<vmem>>, %arg12: memref<1x32xf32, #tpu.memory_space<vmem>>, %arg13: memref<1x32xf32, #tpu.memory_space<vmem>>, %arg14: memref<1x32xf32, #tpu.memory_space<vmem>>, %arg15: memref<16x32xf32, #tpu.memory_space<vmem>>) attributes {dimension_semantics = [#tpu.dimension_semantics<arbitrary>], iteration_bounds = array<i64: 1>, scalar_prefetch = 0 : i64, scratch_operands = 0 : i64, tpu.core_type = #tpu.core_type<tc>, window_params = [{pipeline_mode = #tpu.pipeline_mode<synchronous>, transform_indices = @transform_0, window_bounds = array<i64: 16, 32>}, {pipeline_mode = #tpu.pipeline_mode<synchronous>, transform_indices = @transform_1, window_bounds = array<i64: 32, 32>}, {pipeline_mode = #tpu.pipeline_mode<synchronous>, transform_indices = @transform_2, window_bounds = array<i64: 32, 32>}, {pipeline_mode = #tpu.pipeline_mode<synchronous>, transform_indices = @transform_3, window_bounds = array<i64: 32, 32>}, {pipeline_mode = #tpu.pipeline_mode<synchronous>, transform_indices = @transform_4, window_bounds = array<i64: 32, 32>}, {pipeline_mode = #tpu.pipeline_mode<synchronous>, transform_indices = @transform_5, window_bounds = array<i64: 1, 32>}, {pipeline_mode = #tpu.pipeline_mode<synchronous>, transform_indices = @transform_6, window_bounds = array<i64: 1, 32>}, {pipeline_mode = #tpu.pipeline_mode<synchronous>, transform_indices = @transform_7, window_bounds = array<i64: 1, 32>}, {pipeline_mode = #tpu.pipeline_mode<synchronous>, transform_indices = @transform_8, window_bounds = array<i64: 32, 64>}, {pipeline_mode = #tpu.pipeline_mode<synchronous>, transform_indices = @transform_9, window_bounds = array<i64: 1, 64>}, {pipeline_mode = #tpu.pipeline_mode<synchronous>, transform_indices = @transform_10, window_bounds = array<i64: 64, 32>}, {pipeline_mode = #tpu.pipeline_mode<synchronous>, transform_indices = @transform_11, window_bounds = array<i64: 1, 32>}, {pipeline_mode = #tpu.pipeline_mode<synchronous>, transform_indices = @transform_12, window_bounds = array<i64: 1, 32>}, {pipeline_mode = #tpu.pipeline_mode<synchronous>, transform_indices = @transform_13, window_bounds = array<i64: 1, 32>}, {pipeline_mode = #tpu.pipeline_mode<synchronous>, transform_indices = @transform_14, window_bounds = array<i64: 16, 32>}]} {
    %c0 = arith.constant 0 : index
    %c0_0 = arith.constant 0 : index
    %0 = vector.load %arg1[%c0, %c0_0] : memref<16x32xf32, #tpu.memory_space<vmem>>, vector<16x32xf32>
    %c0_1 = arith.constant 0 : index
    %c0_2 = arith.constant 0 : index
    %1 = vector.load %arg2[%c0_1, %c0_2] : memref<32x32xf32, #tpu.memory_space<vmem>>, vector<32x32xf32>
    %cst = arith.constant dense<0.000000e+00> : vector<16x32xf32>
    %2 = tpu.matmul %0, %1, %cst {dimension_numbers = #tpu.dot_dimension_numbers<[1], [0], [0], [1], [0, 0, 1, 1], [], []>} : vector<16x32xf32>, vector<32x32xf32>, vector<16x32xf32> -> vector<16x32xf32>
    %cst_3 = arith.constant 0.176776692 : f32
    %3 = vector.broadcast %cst_3 : f32 to vector<16x32xf32>
    %4 = arith.mulf %2, %3 : vector<16x32xf32>
    %c0_4 = arith.constant 0 : index
    %c0_5 = arith.constant 0 : index
    %5 = vector.load %arg3[%c0_4, %c0_5] : memref<32x32xf32, #tpu.memory_space<vmem>>, vector<32x32xf32>
    %cst_6 = arith.constant dense<0.000000e+00> : vector<16x32xf32>
    %6 = tpu.matmul %0, %5, %cst_6 {dimension_numbers = #tpu.dot_dimension_numbers<[1], [0], [0], [1], [0, 0, 1, 1], [], []>} : vector<16x32xf32>, vector<32x32xf32>, vector<16x32xf32> -> vector<16x32xf32>
    %c0_7 = arith.constant 0 : index
    %c0_8 = arith.constant 0 : index
    %7 = vector.load %arg4[%c0_7, %c0_8] : memref<32x32xf32, #tpu.memory_space<vmem>>, vector<32x32xf32>
    %cst_9 = arith.constant dense<0.000000e+00> : vector<16x32xf32>
    %8 = tpu.matmul %0, %7, %cst_9 {dimension_numbers = #tpu.dot_dimension_numbers<[1], [0], [0], [1], [0, 0, 1, 1], [], []>} : vector<16x32xf32>, vector<32x32xf32>, vector<16x32xf32> -> vector<16x32xf32>
    %9 = vector.extract_strided_slice %4 {offsets = [0, 0], sizes = [8, 8], strides = [1, 1]} : vector<16x32xf32> to vector<8x8xf32>
    %10 = vector.extract_strided_slice %6 {offsets = [0, 0], sizes = [8, 8], strides = [1, 1]} : vector<16x32xf32> to vector<8x8xf32>
    %11 = vector.extract_strided_slice %8 {offsets = [0, 0], sizes = [8, 8], strides = [1, 1]} : vector<16x32xf32> to vector<8x8xf32>
    %cst_10 = arith.constant dense<0.000000e+00> : vector<8x8xf32>
    %12 = tpu.matmul %9, %10, %cst_10 {dimension_numbers = #tpu.dot_dimension_numbers<[1], [1], [0], [0], [0, 0, 1, 0], [], []>} : vector<8x8xf32>, vector<8x8xf32>, vector<8x8xf32> -> vector<8x8xf32>
    %cst_11 = arith.constant dense<0xFF800000> : vector<8xf32>
    %13 = vector.multi_reduction <maximumf>, %12, %cst_11 [1] : vector<8x8xf32> to vector<8xf32>
    %14 = vector.shape_cast %13 : vector<8xf32> to vector<8x1xf32>
    %15 = vector.broadcast %14 : vector<8x1xf32> to vector<8x8xf32>
    %16 = arith.subf %12, %15 : vector<8x8xf32>
    %17 = math.exp %16 : vector<8x8xf32>
    %cst_12 = arith.constant dense<0.000000e+00> : vector<8xf32>
    %18 = vector.multi_reduction <add>, %17, %cst_12 [1] : vector<8x8xf32> to vector<8xf32>
    %19 = vector.shape_cast %18 : vector<8xf32> to vector<8x1xf32>
    %20 = tpu.reciprocal %19 {approx = true} : vector<8x1xf32> -> vector<8x1xf32>
    %21 = vector.broadcast %20 : vector<8x1xf32> to vector<8x8xf32>
    %22 = arith.mulf %17, %21 : vector<8x8xf32>
    %cst_13 = arith.constant dense<0.000000e+00> : vector<8x8xf32>
    %23 = tpu.matmul %22, %11, %cst_13 {dimension_numbers = #tpu.dot_dimension_numbers<[1], [0], [0], [1], [0, 0, 1, 1], [], []>} : vector<8x8xf32>, vector<8x8xf32>, vector<8x8xf32> -> vector<8x8xf32>
    %24 = vector.extract_strided_slice %23 {offsets = [0, 0], sizes = [1, 8], strides = [1, 1]} : vector<8x8xf32> to vector<1x8xf32>
    %25 = vector.extract_strided_slice %23 {offsets = [1, 0], sizes = [1, 8], strides = [1, 1]} : vector<8x8xf32> to vector<1x8xf32>
    %26 = vector.extract_strided_slice %23 {offsets = [2, 0], sizes = [1, 8], strides = [1, 1]} : vector<8x8xf32> to vector<1x8xf32>
    %27 = vector.extract_strided_slice %23 {offsets = [3, 0], sizes = [1, 8], strides = [1, 1]} : vector<8x8xf32> to vector<1x8xf32>
    %28 = vector.extract_strided_slice %23 {offsets = [4, 0], sizes = [1, 8], strides = [1, 1]} : vector<8x8xf32> to vector<1x8xf32>
    %29 = vector.extract_strided_slice %23 {offsets = [5, 0], sizes = [1, 8], strides = [1, 1]} : vector<8x8xf32> to vector<1x8xf32>
    %30 = vector.extract_strided_slice %23 {offsets = [6, 0], sizes = [1, 8], strides = [1, 1]} : vector<8x8xf32> to vector<1x8xf32>
    %31 = vector.extract_strided_slice %23 {offsets = [7, 0], sizes = [1, 8], strides = [1, 1]} : vector<8x8xf32> to vector<1x8xf32>
    %32 = vector.extract_strided_slice %4 {offsets = [0, 8], sizes = [8, 8], strides = [1, 1]} : vector<16x32xf32> to vector<8x8xf32>
    %33 = vector.extract_strided_slice %6 {offsets = [0, 8], sizes = [8, 8], strides = [1, 1]} : vector<16x32xf32> to vector<8x8xf32>
    %34 = vector.extract_strided_slice %8 {offsets = [0, 8], sizes = [8, 8], strides = [1, 1]} : vector<16x32xf32> to vector<8x8xf32>
    %cst_14 = arith.constant dense<0.000000e+00> : vector<8x8xf32>
    %35 = tpu.matmul %32, %33, %cst_14 {dimension_numbers = #tpu.dot_dimension_numbers<[1], [1], [0], [0], [0, 0, 1, 0], [], []>} : vector<8x8xf32>, vector<8x8xf32>, vector<8x8xf32> -> vector<8x8xf32>
    %cst_15 = arith.constant dense<0xFF800000> : vector<8xf32>
    %36 = vector.multi_reduction <maximumf>, %35, %cst_15 [1] : vector<8x8xf32> to vector<8xf32>
    %37 = vector.shape_cast %36 : vector<8xf32> to vector<8x1xf32>
    %38 = vector.broadcast %37 : vector<8x1xf32> to vector<8x8xf32>
    %39 = arith.subf %35, %38 : vector<8x8xf32>
    %40 = math.exp %39 : vector<8x8xf32>
    %cst_16 = arith.constant dense<0.000000e+00> : vector<8xf32>
    %41 = vector.multi_reduction <add>, %40, %cst_16 [1] : vector<8x8xf32> to vector<8xf32>
    %42 = vector.shape_cast %41 : vector<8xf32> to vector<8x1xf32>
    %43 = tpu.reciprocal %42 {approx = true} : vector<8x1xf32> -> vector<8x1xf32>
    %44 = vector.broadcast %43 : vector<8x1xf32> to vector<8x8xf32>
    %45 = arith.mulf %40, %44 : vector<8x8xf32>
    %cst_17 = arith.constant dense<0.000000e+00> : vector<8x8xf32>
    %46 = tpu.matmul %45, %34, %cst_17 {dimension_numbers = #tpu.dot_dimension_numbers<[1], [0], [0], [1], [0, 0, 1, 1], [], []>} : vector<8x8xf32>, vector<8x8xf32>, vector<8x8xf32> -> vector<8x8xf32>
    %47 = vector.extract_strided_slice %46 {offsets = [0, 0], sizes = [1, 8], strides = [1, 1]} : vector<8x8xf32> to vector<1x8xf32>
    %48 = vector.extract_strided_slice %46 {offsets = [1, 0], sizes = [1, 8], strides = [1, 1]} : vector<8x8xf32> to vector<1x8xf32>
    %49 = vector.extract_strided_slice %46 {offsets = [2, 0], sizes = [1, 8], strides = [1, 1]} : vector<8x8xf32> to vector<1x8xf32>
    %50 = vector.extract_strided_slice %46 {offsets = [3, 0], sizes = [1, 8], strides = [1, 1]} : vector<8x8xf32> to vector<1x8xf32>
    %51 = vector.extract_strided_slice %46 {offsets = [4, 0], sizes = [1, 8], strides = [1, 1]} : vector<8x8xf32> to vector<1x8xf32>
    %52 = vector.extract_strided_slice %46 {offsets = [5, 0], sizes = [1, 8], strides = [1, 1]} : vector<8x8xf32> to vector<1x8xf32>
    %53 = vector.extract_strided_slice %46 {offsets = [6, 0], sizes = [1, 8], strides = [1, 1]} : vector<8x8xf32> to vector<1x8xf32>
    %54 = vector.extract_strided_slice %46 {offsets = [7, 0], sizes = [1, 8], strides = [1, 1]} : vector<8x8xf32> to vector<1x8xf32>
    %55 = vector.extract_strided_slice %4 {offsets = [0, 16], sizes = [8, 8], strides = [1, 1]} : vector<16x32xf32> to vector<8x8xf32>
    %56 = vector.extract_strided_slice %6 {offsets = [0, 16], sizes = [8, 8], strides = [1, 1]} : vector<16x32xf32> to vector<8x8xf32>
    %57 = vector.extract_strided_slice %8 {offsets = [0, 16], sizes = [8, 8], strides = [1, 1]} : vector<16x32xf32> to vector<8x8xf32>
    %cst_18 = arith.constant dense<0.000000e+00> : vector<8x8xf32>
    %58 = tpu.matmul %55, %56, %cst_18 {dimension_numbers = #tpu.dot_dimension_numbers<[1], [1], [0], [0], [0, 0, 1, 0], [], []>} : vector<8x8xf32>, vector<8x8xf32>, vector<8x8xf32> -> vector<8x8xf32>
    %cst_19 = arith.constant dense<0xFF800000> : vector<8xf32>
    %59 = vector.multi_reduction <maximumf>, %58, %cst_19 [1] : vector<8x8xf32> to vector<8xf32>
    %60 = vector.shape_cast %59 : vector<8xf32> to vector<8x1xf32>
    %61 = vector.broadcast %60 : vector<8x1xf32> to vector<8x8xf32>
    %62 = arith.subf %58, %61 : vector<8x8xf32>
    %63 = math.exp %62 : vector<8x8xf32>
    %cst_20 = arith.constant dense<0.000000e+00> : vector<8xf32>
    %64 = vector.multi_reduction <add>, %63, %cst_20 [1] : vector<8x8xf32> to vector<8xf32>
    %65 = vector.shape_cast %64 : vector<8xf32> to vector<8x1xf32>
    %66 = tpu.reciprocal %65 {approx = true} : vector<8x1xf32> -> vector<8x1xf32>
    %67 = vector.broadcast %66 : vector<8x1xf32> to vector<8x8xf32>
    %68 = arith.mulf %63, %67 : vector<8x8xf32>
    %cst_21 = arith.constant dense<0.000000e+00> : vector<8x8xf32>
    %69 = tpu.matmul %68, %57, %cst_21 {dimension_numbers = #tpu.dot_dimension_numbers<[1], [0], [0], [1], [0, 0, 1, 1], [], []>} : vector<8x8xf32>, vector<8x8xf32>, vector<8x8xf32> -> vector<8x8xf32>
    %70 = vector.extract_strided_slice %69 {offsets = [0, 0], sizes = [1, 8], strides = [1, 1]} : vector<8x8xf32> to vector<1x8xf32>
    %71 = vector.extract_strided_slice %69 {offsets = [1, 0], sizes = [1, 8], strides = [1, 1]} : vector<8x8xf32> to vector<1x8xf32>
    %72 = vector.extract_strided_slice %69 {offsets = [2, 0], sizes = [1, 8], strides = [1, 1]} : vector<8x8xf32> to vector<1x8xf32>
    %73 = vector.extract_strided_slice %69 {offsets = [3, 0], sizes = [1, 8], strides = [1, 1]} : vector<8x8xf32> to vector<1x8xf32>
    %74 = vector.extract_strided_slice %69 {offsets = [4, 0], sizes = [1, 8], strides = [1, 1]} : vector<8x8xf32> to vector<1x8xf32>
    %75 = vector.extract_strided_slice %69 {offsets = [5, 0], sizes = [1, 8], strides = [1, 1]} : vector<8x8xf32> to vector<1x8xf32>
    %76 = vector.extract_strided_slice %69 {offsets = [6, 0], sizes = [1, 8], strides = [1, 1]} : vector<8x8xf32> to vector<1x8xf32>
    %77 = vector.extract_strided_slice %69 {offsets = [7, 0], sizes = [1, 8], strides = [1, 1]} : vector<8x8xf32> to vector<1x8xf32>
    %78 = vector.extract_strided_slice %4 {offsets = [0, 24], sizes = [8, 8], strides = [1, 1]} : vector<16x32xf32> to vector<8x8xf32>
    %79 = vector.extract_strided_slice %6 {offsets = [0, 24], sizes = [8, 8], strides = [1, 1]} : vector<16x32xf32> to vector<8x8xf32>
    %80 = vector.extract_strided_slice %8 {offsets = [0, 24], sizes = [8, 8], strides = [1, 1]} : vector<16x32xf32> to vector<8x8xf32>
    %cst_22 = arith.constant dense<0.000000e+00> : vector<8x8xf32>
    %81 = tpu.matmul %78, %79, %cst_22 {dimension_numbers = #tpu.dot_dimension_numbers<[1], [1], [0], [0], [0, 0, 1, 0], [], []>} : vector<8x8xf32>, vector<8x8xf32>, vector<8x8xf32> -> vector<8x8xf32>
    %cst_23 = arith.constant dense<0xFF800000> : vector<8xf32>
    %82 = vector.multi_reduction <maximumf>, %81, %cst_23 [1] : vector<8x8xf32> to vector<8xf32>
    %83 = vector.shape_cast %82 : vector<8xf32> to vector<8x1xf32>
    %84 = vector.broadcast %83 : vector<8x1xf32> to vector<8x8xf32>
    %85 = arith.subf %81, %84 : vector<8x8xf32>
    %86 = math.exp %85 : vector<8x8xf32>
    %cst_24 = arith.constant dense<0.000000e+00> : vector<8xf32>
    %87 = vector.multi_reduction <add>, %86, %cst_24 [1] : vector<8x8xf32> to vector<8xf32>
    %88 = vector.shape_cast %87 : vector<8xf32> to vector<8x1xf32>
    %89 = tpu.reciprocal %88 {approx = true} : vector<8x1xf32> -> vector<8x1xf32>
    %90 = vector.broadcast %89 : vector<8x1xf32> to vector<8x8xf32>
    %91 = arith.mulf %86, %90 : vector<8x8xf32>
    %cst_25 = arith.constant dense<0.000000e+00> : vector<8x8xf32>
    %92 = tpu.matmul %91, %80, %cst_25 {dimension_numbers = #tpu.dot_dimension_numbers<[1], [0], [0], [1], [0, 0, 1, 1], [], []>} : vector<8x8xf32>, vector<8x8xf32>, vector<8x8xf32> -> vector<8x8xf32>
    %93 = vector.extract_strided_slice %92 {offsets = [0, 0], sizes = [1, 8], strides = [1, 1]} : vector<8x8xf32> to vector<1x8xf32>
    %94 = vector.extract_strided_slice %92 {offsets = [1, 0], sizes = [1, 8], strides = [1, 1]} : vector<8x8xf32> to vector<1x8xf32>
    %95 = vector.extract_strided_slice %92 {offsets = [2, 0], sizes = [1, 8], strides = [1, 1]} : vector<8x8xf32> to vector<1x8xf32>
    %96 = vector.extract_strided_slice %92 {offsets = [3, 0], sizes = [1, 8], strides = [1, 1]} : vector<8x8xf32> to vector<1x8xf32>
    %97 = vector.extract_strided_slice %92 {offsets = [4, 0], sizes = [1, 8], strides = [1, 1]} : vector<8x8xf32> to vector<1x8xf32>
    %98 = vector.extract_strided_slice %92 {offsets = [5, 0], sizes = [1, 8], strides = [1, 1]} : vector<8x8xf32> to vector<1x8xf32>
    %99 = vector.extract_strided_slice %92 {offsets = [6, 0], sizes = [1, 8], strides = [1, 1]} : vector<8x8xf32> to vector<1x8xf32>
    %100 = vector.extract_strided_slice %92 {offsets = [7, 0], sizes = [1, 8], strides = [1, 1]} : vector<8x8xf32> to vector<1x8xf32>
    %101 = vector.extract_strided_slice %4 {offsets = [8, 0], sizes = [8, 8], strides = [1, 1]} : vector<16x32xf32> to vector<8x8xf32>
    %102 = vector.extract_strided_slice %6 {offsets = [8, 0], sizes = [8, 8], strides = [1, 1]} : vector<16x32xf32> to vector<8x8xf32>
    %103 = vector.extract_strided_slice %8 {offsets = [8, 0], sizes = [8, 8], strides = [1, 1]} : vector<16x32xf32> to vector<8x8xf32>
    %cst_26 = arith.constant dense<0.000000e+00> : vector<8x8xf32>
    %104 = tpu.matmul %101, %102, %cst_26 {dimension_numbers = #tpu.dot_dimension_numbers<[1], [1], [0], [0], [0, 0, 1, 0], [], []>} : vector<8x8xf32>, vector<8x8xf32>, vector<8x8xf32> -> vector<8x8xf32>
    %cst_27 = arith.constant dense<0xFF800000> : vector<8xf32>
    %105 = vector.multi_reduction <maximumf>, %104, %cst_27 [1] : vector<8x8xf32> to vector<8xf32>
    %106 = vector.shape_cast %105 : vector<8xf32> to vector<8x1xf32>
    %107 = vector.broadcast %106 : vector<8x1xf32> to vector<8x8xf32>
    %108 = arith.subf %104, %107 : vector<8x8xf32>
    %109 = math.exp %108 : vector<8x8xf32>
    %cst_28 = arith.constant dense<0.000000e+00> : vector<8xf32>
    %110 = vector.multi_reduction <add>, %109, %cst_28 [1] : vector<8x8xf32> to vector<8xf32>
    %111 = vector.shape_cast %110 : vector<8xf32> to vector<8x1xf32>
    %112 = tpu.reciprocal %111 {approx = true} : vector<8x1xf32> -> vector<8x1xf32>
    %113 = vector.broadcast %112 : vector<8x1xf32> to vector<8x8xf32>
    %114 = arith.mulf %109, %113 : vector<8x8xf32>
    %cst_29 = arith.constant dense<0.000000e+00> : vector<8x8xf32>
    %115 = tpu.matmul %114, %103, %cst_29 {dimension_numbers = #tpu.dot_dimension_numbers<[1], [0], [0], [1], [0, 0, 1, 1], [], []>} : vector<8x8xf32>, vector<8x8xf32>, vector<8x8xf32> -> vector<8x8xf32>
    %116 = vector.extract_strided_slice %115 {offsets = [0, 0], sizes = [1, 8], strides = [1, 1]} : vector<8x8xf32> to vector<1x8xf32>
    %117 = vector.extract_strided_slice %115 {offsets = [1, 0], sizes = [1, 8], strides = [1, 1]} : vector<8x8xf32> to vector<1x8xf32>
    %118 = vector.extract_strided_slice %115 {offsets = [2, 0], sizes = [1, 8], strides = [1, 1]} : vector<8x8xf32> to vector<1x8xf32>
    %119 = vector.extract_strided_slice %115 {offsets = [3, 0], sizes = [1, 8], strides = [1, 1]} : vector<8x8xf32> to vector<1x8xf32>
    %120 = vector.extract_strided_slice %115 {offsets = [4, 0], sizes = [1, 8], strides = [1, 1]} : vector<8x8xf32> to vector<1x8xf32>
    %121 = vector.extract_strided_slice %115 {offsets = [5, 0], sizes = [1, 8], strides = [1, 1]} : vector<8x8xf32> to vector<1x8xf32>
    %122 = vector.extract_strided_slice %115 {offsets = [6, 0], sizes = [1, 8], strides = [1, 1]} : vector<8x8xf32> to vector<1x8xf32>
    %123 = vector.extract_strided_slice %115 {offsets = [7, 0], sizes = [1, 8], strides = [1, 1]} : vector<8x8xf32> to vector<1x8xf32>
    %124 = vector.extract_strided_slice %4 {offsets = [8, 8], sizes = [8, 8], strides = [1, 1]} : vector<16x32xf32> to vector<8x8xf32>
    %125 = vector.extract_strided_slice %6 {offsets = [8, 8], sizes = [8, 8], strides = [1, 1]} : vector<16x32xf32> to vector<8x8xf32>
    %126 = vector.extract_strided_slice %8 {offsets = [8, 8], sizes = [8, 8], strides = [1, 1]} : vector<16x32xf32> to vector<8x8xf32>
    %cst_30 = arith.constant dense<0.000000e+00> : vector<8x8xf32>
    %127 = tpu.matmul %124, %125, %cst_30 {dimension_numbers = #tpu.dot_dimension_numbers<[1], [1], [0], [0], [0, 0, 1, 0], [], []>} : vector<8x8xf32>, vector<8x8xf32>, vector<8x8xf32> -> vector<8x8xf32>
    %cst_31 = arith.constant dense<0xFF800000> : vector<8xf32>
    %128 = vector.multi_reduction <maximumf>, %127, %cst_31 [1] : vector<8x8xf32> to vector<8xf32>
    %129 = vector.shape_cast %128 : vector<8xf32> to vector<8x1xf32>
    %130 = vector.broadcast %129 : vector<8x1xf32> to vector<8x8xf32>
    %131 = arith.subf %127, %130 : vector<8x8xf32>
    %132 = math.exp %131 : vector<8x8xf32>
    %cst_32 = arith.constant dense<0.000000e+00> : vector<8xf32>
    %133 = vector.multi_reduction <add>, %132, %cst_32 [1] : vector<8x8xf32> to vector<8xf32>
    %134 = vector.shape_cast %133 : vector<8xf32> to vector<8x1xf32>
    %135 = tpu.reciprocal %134 {approx = true} : vector<8x1xf32> -> vector<8x1xf32>
    %136 = vector.broadcast %135 : vector<8x1xf32> to vector<8x8xf32>
    %137 = arith.mulf %132, %136 : vector<8x8xf32>
    %cst_33 = arith.constant dense<0.000000e+00> : vector<8x8xf32>
    %138 = tpu.matmul %137, %126, %cst_33 {dimension_numbers = #tpu.dot_dimension_numbers<[1], [0], [0], [1], [0, 0, 1, 1], [], []>} : vector<8x8xf32>, vector<8x8xf32>, vector<8x8xf32> -> vector<8x8xf32>
    %139 = vector.extract_strided_slice %138 {offsets = [0, 0], sizes = [1, 8], strides = [1, 1]} : vector<8x8xf32> to vector<1x8xf32>
    %140 = vector.extract_strided_slice %138 {offsets = [1, 0], sizes = [1, 8], strides = [1, 1]} : vector<8x8xf32> to vector<1x8xf32>
    %141 = vector.extract_strided_slice %138 {offsets = [2, 0], sizes = [1, 8], strides = [1, 1]} : vector<8x8xf32> to vector<1x8xf32>
    %142 = vector.extract_strided_slice %138 {offsets = [3, 0], sizes = [1, 8], strides = [1, 1]} : vector<8x8xf32> to vector<1x8xf32>
    %143 = vector.extract_strided_slice %138 {offsets = [4, 0], sizes = [1, 8], strides = [1, 1]} : vector<8x8xf32> to vector<1x8xf32>
    %144 = vector.extract_strided_slice %138 {offsets = [5, 0], sizes = [1, 8], strides = [1, 1]} : vector<8x8xf32> to vector<1x8xf32>
    %145 = vector.extract_strided_slice %138 {offsets = [6, 0], sizes = [1, 8], strides = [1, 1]} : vector<8x8xf32> to vector<1x8xf32>
    %146 = vector.extract_strided_slice %138 {offsets = [7, 0], sizes = [1, 8], strides = [1, 1]} : vector<8x8xf32> to vector<1x8xf32>
    %147 = vector.extract_strided_slice %4 {offsets = [8, 16], sizes = [8, 8], strides = [1, 1]} : vector<16x32xf32> to vector<8x8xf32>
    %148 = vector.extract_strided_slice %6 {offsets = [8, 16], sizes = [8, 8], strides = [1, 1]} : vector<16x32xf32> to vector<8x8xf32>
    %149 = vector.extract_strided_slice %8 {offsets = [8, 16], sizes = [8, 8], strides = [1, 1]} : vector<16x32xf32> to vector<8x8xf32>
    %cst_34 = arith.constant dense<0.000000e+00> : vector<8x8xf32>
    %150 = tpu.matmul %147, %148, %cst_34 {dimension_numbers = #tpu.dot_dimension_numbers<[1], [1], [0], [0], [0, 0, 1, 0], [], []>} : vector<8x8xf32>, vector<8x8xf32>, vector<8x8xf32> -> vector<8x8xf32>
    %cst_35 = arith.constant dense<0xFF800000> : vector<8xf32>
    %151 = vector.multi_reduction <maximumf>, %150, %cst_35 [1] : vector<8x8xf32> to vector<8xf32>
    %152 = vector.shape_cast %151 : vector<8xf32> to vector<8x1xf32>
    %153 = vector.broadcast %152 : vector<8x1xf32> to vector<8x8xf32>
    %154 = arith.subf %150, %153 : vector<8x8xf32>
    %155 = math.exp %154 : vector<8x8xf32>
    %cst_36 = arith.constant dense<0.000000e+00> : vector<8xf32>
    %156 = vector.multi_reduction <add>, %155, %cst_36 [1] : vector<8x8xf32> to vector<8xf32>
    %157 = vector.shape_cast %156 : vector<8xf32> to vector<8x1xf32>
    %158 = tpu.reciprocal %157 {approx = true} : vector<8x1xf32> -> vector<8x1xf32>
    %159 = vector.broadcast %158 : vector<8x1xf32> to vector<8x8xf32>
    %160 = arith.mulf %155, %159 : vector<8x8xf32>
    %cst_37 = arith.constant dense<0.000000e+00> : vector<8x8xf32>
    %161 = tpu.matmul %160, %149, %cst_37 {dimension_numbers = #tpu.dot_dimension_numbers<[1], [0], [0], [1], [0, 0, 1, 1], [], []>} : vector<8x8xf32>, vector<8x8xf32>, vector<8x8xf32> -> vector<8x8xf32>
    %162 = vector.extract_strided_slice %161 {offsets = [0, 0], sizes = [1, 8], strides = [1, 1]} : vector<8x8xf32> to vector<1x8xf32>
    %163 = vector.extract_strided_slice %161 {offsets = [1, 0], sizes = [1, 8], strides = [1, 1]} : vector<8x8xf32> to vector<1x8xf32>
    %164 = vector.extract_strided_slice %161 {offsets = [2, 0], sizes = [1, 8], strides = [1, 1]} : vector<8x8xf32> to vector<1x8xf32>
    %165 = vector.extract_strided_slice %161 {offsets = [3, 0], sizes = [1, 8], strides = [1, 1]} : vector<8x8xf32> to vector<1x8xf32>
    %166 = vector.extract_strided_slice %161 {offsets = [4, 0], sizes = [1, 8], strides = [1, 1]} : vector<8x8xf32> to vector<1x8xf32>
    %167 = vector.extract_strided_slice %161 {offsets = [5, 0], sizes = [1, 8], strides = [1, 1]} : vector<8x8xf32> to vector<1x8xf32>
    %168 = vector.extract_strided_slice %161 {offsets = [6, 0], sizes = [1, 8], strides = [1, 1]} : vector<8x8xf32> to vector<1x8xf32>
    %169 = vector.extract_strided_slice %161 {offsets = [7, 0], sizes = [1, 8], strides = [1, 1]} : vector<8x8xf32> to vector<1x8xf32>
    %170 = vector.extract_strided_slice %4 {offsets = [8, 24], sizes = [8, 8], strides = [1, 1]} : vector<16x32xf32> to vector<8x8xf32>
    %171 = vector.extract_strided_slice %6 {offsets = [8, 24], sizes = [8, 8], strides = [1, 1]} : vector<16x32xf32> to vector<8x8xf32>
    %172 = vector.extract_strided_slice %8 {offsets = [8, 24], sizes = [8, 8], strides = [1, 1]} : vector<16x32xf32> to vector<8x8xf32>
    %cst_38 = arith.constant dense<0.000000e+00> : vector<8x8xf32>
    %173 = tpu.matmul %170, %171, %cst_38 {dimension_numbers = #tpu.dot_dimension_numbers<[1], [1], [0], [0], [0, 0, 1, 0], [], []>} : vector<8x8xf32>, vector<8x8xf32>, vector<8x8xf32> -> vector<8x8xf32>
    %cst_39 = arith.constant dense<0xFF800000> : vector<8xf32>
    %174 = vector.multi_reduction <maximumf>, %173, %cst_39 [1] : vector<8x8xf32> to vector<8xf32>
    %175 = vector.shape_cast %174 : vector<8xf32> to vector<8x1xf32>
    %176 = vector.broadcast %175 : vector<8x1xf32> to vector<8x8xf32>
    %177 = arith.subf %173, %176 : vector<8x8xf32>
    %178 = math.exp %177 : vector<8x8xf32>
    %cst_40 = arith.constant dense<0.000000e+00> : vector<8xf32>
    %179 = vector.multi_reduction <add>, %178, %cst_40 [1] : vector<8x8xf32> to vector<8xf32>
    %180 = vector.shape_cast %179 : vector<8xf32> to vector<8x1xf32>
    %181 = tpu.reciprocal %180 {approx = true} : vector<8x1xf32> -> vector<8x1xf32>
    %182 = vector.broadcast %181 : vector<8x1xf32> to vector<8x8xf32>
    %183 = arith.mulf %178, %182 : vector<8x8xf32>
    %cst_41 = arith.constant dense<0.000000e+00> : vector<8x8xf32>
    %184 = tpu.matmul %183, %172, %cst_41 {dimension_numbers = #tpu.dot_dimension_numbers<[1], [0], [0], [1], [0, 0, 1, 1], [], []>} : vector<8x8xf32>, vector<8x8xf32>, vector<8x8xf32> -> vector<8x8xf32>
    %185 = vector.extract_strided_slice %184 {offsets = [0, 0], sizes = [1, 8], strides = [1, 1]} : vector<8x8xf32> to vector<1x8xf32>
    %186 = vector.extract_strided_slice %184 {offsets = [1, 0], sizes = [1, 8], strides = [1, 1]} : vector<8x8xf32> to vector<1x8xf32>
    %187 = vector.extract_strided_slice %184 {offsets = [2, 0], sizes = [1, 8], strides = [1, 1]} : vector<8x8xf32> to vector<1x8xf32>
    %188 = vector.extract_strided_slice %184 {offsets = [3, 0], sizes = [1, 8], strides = [1, 1]} : vector<8x8xf32> to vector<1x8xf32>
    %189 = vector.extract_strided_slice %184 {offsets = [4, 0], sizes = [1, 8], strides = [1, 1]} : vector<8x8xf32> to vector<1x8xf32>
    %190 = vector.extract_strided_slice %184 {offsets = [5, 0], sizes = [1, 8], strides = [1, 1]} : vector<8x8xf32> to vector<1x8xf32>
    %191 = vector.extract_strided_slice %184 {offsets = [6, 0], sizes = [1, 8], strides = [1, 1]} : vector<8x8xf32> to vector<1x8xf32>
    %192 = vector.extract_strided_slice %184 {offsets = [7, 0], sizes = [1, 8], strides = [1, 1]} : vector<8x8xf32> to vector<1x8xf32>
    %193 = tpu.concatenate %24, %25, %26, %27 in 1 : vector<1x8xf32>, vector<1x8xf32>, vector<1x8xf32>, vector<1x8xf32> -> vector<1x32xf32>
    %194 = tpu.concatenate %28, %29, %30, %31 in 1 : vector<1x8xf32>, vector<1x8xf32>, vector<1x8xf32>, vector<1x8xf32> -> vector<1x32xf32>
    %195 = tpu.concatenate %47, %48, %49, %50 in 1 : vector<1x8xf32>, vector<1x8xf32>, vector<1x8xf32>, vector<1x8xf32> -> vector<1x32xf32>
    %196 = tpu.concatenate %51, %52, %53, %54 in 1 : vector<1x8xf32>, vector<1x8xf32>, vector<1x8xf32>, vector<1x8xf32> -> vector<1x32xf32>
    %197 = tpu.concatenate %70, %71, %72, %73 in 1 : vector<1x8xf32>, vector<1x8xf32>, vector<1x8xf32>, vector<1x8xf32> -> vector<1x32xf32>
    %198 = tpu.concatenate %74, %75, %76, %77 in 1 : vector<1x8xf32>, vector<1x8xf32>, vector<1x8xf32>, vector<1x8xf32> -> vector<1x32xf32>
    %199 = tpu.concatenate %93, %94, %95, %96 in 1 : vector<1x8xf32>, vector<1x8xf32>, vector<1x8xf32>, vector<1x8xf32> -> vector<1x32xf32>
    %200 = tpu.concatenate %97, %98, %99, %100 in 1 : vector<1x8xf32>, vector<1x8xf32>, vector<1x8xf32>, vector<1x8xf32> -> vector<1x32xf32>
    %201 = tpu.concatenate %116, %117, %118, %119 in 1 : vector<1x8xf32>, vector<1x8xf32>, vector<1x8xf32>, vector<1x8xf32> -> vector<1x32xf32>
    %202 = tpu.concatenate %120, %121, %122, %123 in 1 : vector<1x8xf32>, vector<1x8xf32>, vector<1x8xf32>, vector<1x8xf32> -> vector<1x32xf32>
    %203 = tpu.concatenate %139, %140, %141, %142 in 1 : vector<1x8xf32>, vector<1x8xf32>, vector<1x8xf32>, vector<1x8xf32> -> vector<1x32xf32>
    %204 = tpu.concatenate %143, %144, %145, %146 in 1 : vector<1x8xf32>, vector<1x8xf32>, vector<1x8xf32>, vector<1x8xf32> -> vector<1x32xf32>
    %205 = tpu.concatenate %162, %163, %164, %165 in 1 : vector<1x8xf32>, vector<1x8xf32>, vector<1x8xf32>, vector<1x8xf32> -> vector<1x32xf32>
    %206 = tpu.concatenate %166, %167, %168, %169 in 1 : vector<1x8xf32>, vector<1x8xf32>, vector<1x8xf32>, vector<1x8xf32> -> vector<1x32xf32>
    %207 = tpu.concatenate %185, %186, %187, %188 in 1 : vector<1x8xf32>, vector<1x8xf32>, vector<1x8xf32>, vector<1x8xf32> -> vector<1x32xf32>
    %208 = tpu.concatenate %189, %190, %191, %192 in 1 : vector<1x8xf32>, vector<1x8xf32>, vector<1x8xf32>, vector<1x8xf32> -> vector<1x32xf32>
    %209 = tpu.concatenate %193, %194, %195, %196, %197, %198, %199, %200, %201, %202, %203, %204, %205, %206, %207, %208 in 0 : vector<1x32xf32>, vector<1x32xf32>, vector<1x32xf32>, vector<1x32xf32>, vector<1x32xf32>, vector<1x32xf32>, vector<1x32xf32>, vector<1x32xf32>, vector<1x32xf32>, vector<1x32xf32>, vector<1x32xf32>, vector<1x32xf32>, vector<1x32xf32>, vector<1x32xf32>, vector<1x32xf32>, vector<1x32xf32> -> vector<16x32xf32>
    %c0_42 = arith.constant 0 : index
    %c0_43 = arith.constant 0 : index
    %210 = vector.load %arg5[%c0_42, %c0_43] : memref<32x32xf32, #tpu.memory_space<vmem>>, vector<32x32xf32>
    %cst_44 = arith.constant dense<0.000000e+00> : vector<16x32xf32>
    %211 = tpu.matmul %209, %210, %cst_44 {dimension_numbers = #tpu.dot_dimension_numbers<[1], [0], [0], [1], [0, 0, 1, 1], [], []>} : vector<16x32xf32>, vector<32x32xf32>, vector<16x32xf32> -> vector<16x32xf32>
    %c0_45 = arith.constant 0 : index
    %c0_46 = arith.constant 0 : index
    %212 = vector.load %arg6[%c0_45, %c0_46] : memref<1x32xf32, #tpu.memory_space<vmem>>, vector<1x32xf32>
    %213 = vector.broadcast %212 : vector<1x32xf32> to vector<16x32xf32>
    %214 = arith.addf %211, %213 : vector<16x32xf32>
    %215 = arith.addf %0, %214 : vector<16x32xf32>
    %cst_47 = arith.constant dense<0.000000e+00> : vector<16xf32>
    %216 = vector.multi_reduction <add>, %215, %cst_47 [1] : vector<16x32xf32> to vector<16xf32>
    %217 = vector.shape_cast %216 : vector<16xf32> to vector<16x1xf32>
    %cst_48 = arith.constant 3.200000e+01 : f32
    %218 = vector.broadcast %cst_48 : f32 to vector<16x1xf32>
    %219 = arith.divf %217, %218 : vector<16x1xf32>
    %220 = vector.broadcast %219 : vector<16x1xf32> to vector<16x32xf32>
    %221 = arith.subf %215, %220 : vector<16x32xf32>
    %222 = arith.mulf %221, %221 : vector<16x32xf32>
    %cst_49 = arith.constant dense<0.000000e+00> : vector<16xf32>
    %223 = vector.multi_reduction <add>, %222, %cst_49 [1] : vector<16x32xf32> to vector<16xf32>
    %224 = vector.shape_cast %223 : vector<16xf32> to vector<16x1xf32>
    %cst_50 = arith.constant 3.200000e+01 : f32
    %225 = vector.broadcast %cst_50 : f32 to vector<16x1xf32>
    %226 = arith.divf %224, %225 : vector<16x1xf32>
    %227 = vector.broadcast %219 : vector<16x1xf32> to vector<16x32xf32>
    %228 = arith.subf %215, %227 : vector<16x32xf32>
    %cst_51 = arith.constant 9.99999974E-6 : f32
    %229 = vector.broadcast %cst_51 : f32 to vector<16x1xf32>
    %230 = arith.addf %226, %229 : vector<16x1xf32>
    %231 = math.rsqrt %230 : vector<16x1xf32>
    %232 = vector.broadcast %231 : vector<16x1xf32> to vector<16x32xf32>
    %233 = arith.mulf %228, %232 : vector<16x32xf32>
    %c0_52 = arith.constant 0 : index
    %c0_53 = arith.constant 0 : index
    %234 = vector.load %arg7[%c0_52, %c0_53] : memref<1x32xf32, #tpu.memory_space<vmem>>, vector<1x32xf32>
    %235 = vector.broadcast %234 : vector<1x32xf32> to vector<16x32xf32>
    %236 = arith.mulf %233, %235 : vector<16x32xf32>
    %c0_54 = arith.constant 0 : index
    %c0_55 = arith.constant 0 : index
    %237 = vector.load %arg8[%c0_54, %c0_55] : memref<1x32xf32, #tpu.memory_space<vmem>>, vector<1x32xf32>
    %238 = vector.broadcast %237 : vector<1x32xf32> to vector<16x32xf32>
    %239 = arith.addf %236, %238 : vector<16x32xf32>
    %c0_56 = arith.constant 0 : index
    %c0_57 = arith.constant 0 : index
    %240 = vector.load %arg9[%c0_56, %c0_57] : memref<32x64xf32, #tpu.memory_space<vmem>>, vector<32x64xf32>
    %cst_58 = arith.constant dense<0.000000e+00> : vector<16x64xf32>
    %241 = tpu.matmul %239, %240, %cst_58 {dimension_numbers = #tpu.dot_dimension_numbers<[1], [0], [0], [1], [0, 0, 1, 1], [], []>} : vector<16x32xf32>, vector<32x64xf32>, vector<16x64xf32> -> vector<16x64xf32>
    %c0_59 = arith.constant 0 : index
    %c0_60 = arith.constant 0 : index
    %242 = vector.load %arg10[%c0_59, %c0_60] : memref<1x64xf32, #tpu.memory_space<vmem>>, vector<1x64xf32>
    %243 = vector.broadcast %242 : vector<1x64xf32> to vector<16x64xf32>
    %244 = arith.addf %241, %243 : vector<16x64xf32>
    %cst_61 = arith.constant 0.000000e+00 : f32
    %245 = vector.broadcast %cst_61 : f32 to vector<16x64xf32>
    %246 = arith.maximumf %244, %245 : vector<16x64xf32>
    %c0_62 = arith.constant 0 : index
    %c0_63 = arith.constant 0 : index
    %247 = vector.load %arg11[%c0_62, %c0_63] : memref<64x32xf32, #tpu.memory_space<vmem>>, vector<64x32xf32>
    %cst_64 = arith.constant dense<0.000000e+00> : vector<16x32xf32>
    %248 = tpu.matmul %246, %247, %cst_64 {dimension_numbers = #tpu.dot_dimension_numbers<[1], [0], [0], [1], [0, 0, 1, 1], [], []>} : vector<16x64xf32>, vector<64x32xf32>, vector<16x32xf32> -> vector<16x32xf32>
    %c0_65 = arith.constant 0 : index
    %c0_66 = arith.constant 0 : index
    %249 = vector.load %arg12[%c0_65, %c0_66] : memref<1x32xf32, #tpu.memory_space<vmem>>, vector<1x32xf32>
    %250 = vector.broadcast %249 : vector<1x32xf32> to vector<16x32xf32>
    %251 = arith.addf %248, %250 : vector<16x32xf32>
    %252 = arith.addf %239, %251 : vector<16x32xf32>
    %cst_67 = arith.constant dense<0.000000e+00> : vector<16xf32>
    %253 = vector.multi_reduction <add>, %252, %cst_67 [1] : vector<16x32xf32> to vector<16xf32>
    %254 = vector.shape_cast %253 : vector<16xf32> to vector<16x1xf32>
    %cst_68 = arith.constant 3.200000e+01 : f32
    %255 = vector.broadcast %cst_68 : f32 to vector<16x1xf32>
    %256 = arith.divf %254, %255 : vector<16x1xf32>
    %257 = vector.broadcast %256 : vector<16x1xf32> to vector<16x32xf32>
    %258 = arith.subf %252, %257 : vector<16x32xf32>
    %259 = arith.mulf %258, %258 : vector<16x32xf32>
    %cst_69 = arith.constant dense<0.000000e+00> : vector<16xf32>
    %260 = vector.multi_reduction <add>, %259, %cst_69 [1] : vector<16x32xf32> to vector<16xf32>
    %261 = vector.shape_cast %260 : vector<16xf32> to vector<16x1xf32>
    %cst_70 = arith.constant 3.200000e+01 : f32
    %262 = vector.broadcast %cst_70 : f32 to vector<16x1xf32>
    %263 = arith.divf %261, %262 : vector<16x1xf32>
    %264 = vector.broadcast %256 : vector<16x1xf32> to vector<16x32xf32>
    %265 = arith.subf %252, %264 : vector<16x32xf32>
    %cst_71 = arith.constant 9.99999974E-6 : f32
    %266 = vector.broadcast %cst_71 : f32 to vector<16x1xf32>
    %267 = arith.addf %263, %266 : vector<16x1xf32>
    %268 = math.rsqrt %267 : vector<16x1xf32>
    %269 = vector.broadcast %268 : vector<16x1xf32> to vector<16x32xf32>
    %270 = arith.mulf %265, %269 : vector<16x32xf32>
    %c0_72 = arith.constant 0 : index
    %c0_73 = arith.constant 0 : index
    %271 = vector.load %arg13[%c0_72, %c0_73] : memref<1x32xf32, #tpu.memory_space<vmem>>, vector<1x32xf32>
    %272 = vector.broadcast %271 : vector<1x32xf32> to vector<16x32xf32>
    %273 = arith.mulf %270, %272 : vector<16x32xf32>
    %c0_74 = arith.constant 0 : index
    %c0_75 = arith.constant 0 : index
    %274 = vector.load %arg14[%c0_74, %c0_75] : memref<1x32xf32, #tpu.memory_space<vmem>>, vector<1x32xf32>
    %275 = vector.broadcast %274 : vector<1x32xf32> to vector<16x32xf32>
    %276 = arith.addf %273, %275 : vector<16x32xf32>
    %c0_76 = arith.constant 0 : index
    %c0_77 = arith.constant 0 : index
    %277 = vector.load %arg15[%c0_76, %c0_77] : memref<16x32xf32, #tpu.memory_space<vmem>>, vector<16x32xf32>
    tpu.vector_store %arg15[%c0_76, %c0_77], %276 {strides = array<i32>} : memref<16x32xf32, #tpu.memory_space<vmem>>, vector<16x32xf32>,
    return
  }
  func.func @transform_0(%arg0: i32) -> (i32, i32) {
    %c0_i32 = arith.constant 0 : i32
    %c0_i32_0 = arith.constant 0 : i32
    %c0_i32_1 = arith.constant 0 : i32
    return %c0_i32, %c0_i32_0 : i32, i32
  }
  func.func @transform_1(%arg0: i32) -> (i32, i32) {
    %c0_i32 = arith.constant 0 : i32
    %c0_i32_0 = arith.constant 0 : i32
    %c0_i32_1 = arith.constant 0 : i32
    return %c0_i32, %c0_i32_0 : i32, i32
  }
  func.func @transform_2(%arg0: i32) -> (i32, i32) {
    %c0_i32 = arith.constant 0 : i32
    %c0_i32_0 = arith.constant 0 : i32
    %c0_i32_1 = arith.constant 0 : i32
    return %c0_i32, %c0_i32_0 : i32, i32
  }
  func.func @transform_3(%arg0: i32) -> (i32, i32) {
    %c0_i32 = arith.constant 0 : i32
    %c0_i32_0 = arith.constant 0 : i32
    %c0_i32_1 = arith.constant 0 : i32
    return %c0_i32, %c0_i32_0 : i32, i32
  }
  func.func @transform_4(%arg0: i32) -> (i32, i32) {
    %c0_i32 = arith.constant 0 : i32
    %c0_i32_0 = arith.constant 0 : i32
    %c0_i32_1 = arith.constant 0 : i32
    return %c0_i32, %c0_i32_0 : i32, i32
  }
  func.func @transform_5(%arg0: i32) -> (i32, i32) {
    %c0_i32 = arith.constant 0 : i32
    %c0_i32_0 = arith.constant 0 : i32
    %c0_i32_1 = arith.constant 0 : i32
    return %c0_i32, %c0_i32_0 : i32, i32
  }
  func.func @transform_6(%arg0: i32) -> (i32, i32) {
    %c0_i32 = arith.constant 0 : i32
    %c0_i32_0 = arith.constant 0 : i32
    %c0_i32_1 = arith.constant 0 : i32
    return %c0_i32, %c0_i32_0 : i32, i32
  }
  func.func @transform_7(%arg0: i32) -> (i32, i32) {
    %c0_i32 = arith.constant 0 : i32
    %c0_i32_0 = arith.constant 0 : i32
    %c0_i32_1 = arith.constant 0 : i32
    return %c0_i32, %c0_i32_0 : i32, i32
  }
  func.func @transform_8(%arg0: i32) -> (i32, i32) {
    %c0_i32 = arith.constant 0 : i32
    %c0_i32_0 = arith.constant 0 : i32
    %c0_i32_1 = arith.constant 0 : i32
    return %c0_i32, %c0_i32_0 : i32, i32
  }
  func.func @transform_9(%arg0: i32) -> (i32, i32) {
    %c0_i32 = arith.constant 0 : i32
    %c0_i32_0 = arith.constant 0 : i32
    %c0_i32_1 = arith.constant 0 : i32
    return %c0_i32, %c0_i32_0 : i32, i32
  }
  func.func @transform_10(%arg0: i32) -> (i32, i32) {
    %c0_i32 = arith.constant 0 : i32
    %c0_i32_0 = arith.constant 0 : i32
    %c0_i32_1 = arith.constant 0 : i32
    return %c0_i32, %c0_i32_0 : i32, i32
  }
  func.func @transform_11(%arg0: i32) -> (i32, i32) {
    %c0_i32 = arith.constant 0 : i32
    %c0_i32_0 = arith.constant 0 : i32
    %c0_i32_1 = arith.constant 0 : i32
    return %c0_i32, %c0_i32_0 : i32, i32
  }
  func.func @transform_12(%arg0: i32) -> (i32, i32) {
    %c0_i32 = arith.constant 0 : i32
    %c0_i32_0 = arith.constant 0 : i32
    %c0_i32_1 = arith.constant 0 : i32
    return %c0_i32, %c0_i32_0 : i32, i32
  }
  func.func @transform_13(%arg0: i32) -> (i32, i32) {
    %c0_i32 = arith.constant 0 : i32
    %c0_i32_0 = arith.constant 0 : i32
    %c0_i32_1 = arith.constant 0 : i32
    return %c0_i32, %c0_i32_0 : i32, i32
  }
  func.func @transform_14(%arg0: i32) -> (i32, i32) {
    %c0_i32 = arith.constant 0 : i32
    %c0_i32_0 = arith.constant 0 : i32
    %c0_i32_1 = arith.constant 0 : i32
    return %c0_i32, %c0_i32_0 : i32, i32
  }
}

</mosaic_0001>

<llo_original>
// kernel: tpu_custom_call.1
$region0: #{tpu_custom_call.1}
  #allocation0 [shape = 'u32[]', space=smem, size = 0x4, offset = 0x4, fixed_abs, tag = 'smem constant byte address 0x4 - core index']
  #allocation1 [shape = 'u32[144,128]{1,0:T(1,128)}', space=vmem, size = 0x12000, scoped, tag = 'internal scratch']
  %s0 = inlined_call_operand.hbm [shape: f32[16,32], index: 0, kind: input, shape index: {}]
  %s1 = inlined_call_operand.vmem [shape: f32[32,32], index: 1, kind: input, shape index: {}]
  %s2 = inlined_call_operand.vmem [shape: f32[32,32], index: 2, kind: input, shape index: {}]
  %s3 = inlined_call_operand.vmem [shape: f32[32,32], index: 3, kind: input, shape index: {}]
  %s4 = inlined_call_operand.hbm [shape: f32[32,32], index: 4, kind: input, shape index: {}]
  %s5 = inlined_call_operand.vmem [shape: f32[1,32], index: 5, kind: input, shape index: {}]
  %s6 = inlined_call_operand.vmem [shape: f32[1,32], index: 6, kind: input, shape index: {}]
  %s7 = inlined_call_operand.vmem [shape: f32[1,32], index: 7, kind: input, shape index: {}]
  %s8 = inlined_call_operand.hbm [shape: f32[32,64], index: 8, kind: input, shape index: {}]
  %s9 = inlined_call_operand.vmem [shape: f32[1,64], index: 9, kind: input, shape index: {}]
  %s10 = inlined_call_operand.vmem [shape: f32[64,32], index: 10, kind: input, shape index: {}]
  %s11 = inlined_call_operand.vmem [shape: f32[1,32], index: 11, kind: input, shape index: {}]
  %s12 = inlined_call_operand.vmem [shape: f32[1,32], index: 12, kind: input, shape index: {}]
  %s13 = inlined_call_operand.vmem [shape: f32[1,32], index: 13, kind: input, shape index: {}]
  %s14 = inlined_call_operand.hbm [shape: f32[16,32], index: 14, kind: output, shape index: {}]
  %s15 = sld [smem:[#allocation0]]
  $region78: #{tpu_custom_call.1} parent=0
    _
  %s17 = ssub.s32 1, %s15
  %s18 = scalar_select 0, %s17, %s15
  $region1: #{tpu_custom_call.1} parent=0
    #allocation2 [shape = 'u8[8192]{0}', space=vmem, size = 0x2000, scoped, tag = 'input window, operand 0, single buffered']
    #allocation3 [shape = 's32[1]{0}', space=sflag, size = 0x4, scoped, tag = 'scoped memory for tpu_custom_call.1']
    #allocation4 [shape = 's32[1]{0}', space=sflag, size = 0x4, scoped, tag = 'scoped memory for tpu_custom_call.1']
    #allocation5 [shape = 'u8[16384]{0}', space=vmem, size = 0x4000, scoped, tag = 'input window, operand 4, single buffered']
    #allocation6 [shape = 's32[1]{0}', space=sflag, size = 0x4, scoped, tag = 'scoped memory for tpu_custom_call.1']
    #allocation7 [shape = 'u8[16384]{0}', space=vmem, size = 0x4000, scoped, tag = 'input window, operand 8, single buffered']
    #allocation8 [shape = 'u8[8192]{0}', space=vmem, size = 0x2000, scoped, tag = 'output window, operand 0, single buffered']
    %19 = vsyncpa [#allocation3], 0
    %20 = vsyncpa [#allocation6], 0
    %21 = vsyncpa [#allocation4], 0
    // Predicated region
    $region2: #{tpu_custom_call.1} parent=1 // pred_check
      _
    $region3: #{tpu_custom_call.1} parent=1 // pred_check_branch
      %23 = sbr.rel (0) target = $region5
    $region4: #{tpu_custom_call.1} parent=1 // pred_region
      %s25 = ssub.s32 256, 256
      %26 = vsyncadd [#allocation3], %s25
      %s27 = sshll.u32 [#allocation2], 4
      %s28 = int_to_ptr.vmem [resolvable:$true] %s27
      %33 = dma.hbm_to_vmem [thread:$0]  %s0, 256, %s28, [#allocation3], 128, 128, 8
    $region5: #{tpu_custom_call.1} parent=1 // pred_fallthru
      _
    // Predicated region
    $region6: #{tpu_custom_call.1} parent=1 // pred_check
      _
    $region7: #{tpu_custom_call.1} parent=1 // pred_check_branch
      %35 = sbr.rel (0) target = $region9
    $region8: #{tpu_custom_call.1} parent=1 // pred_region
      _
    $region9: #{tpu_custom_call.1} parent=1 // pred_fallthru
      _
    // Predicated region
    $region10: #{tpu_custom_call.1} parent=1 // pred_check
      _
    $region11: #{tpu_custom_call.1} parent=1 // pred_check_branch
      %37 = sbr.rel (0) target = $region13
    $region12: #{tpu_custom_call.1} parent=1 // pred_region
      _
    $region13: #{tpu_custom_call.1} parent=1 // pred_fallthru
      _
    // Predicated region
    $region14: #{tpu_custom_call.1} parent=1 // pred_check
      _
    $region15: #{tpu_custom_call.1} parent=1 // pred_check_branch
      %39 = sbr.rel (0) target = $region17
    $region16: #{tpu_custom_call.1} parent=1 // pred_region
      _
    $region17: #{tpu_custom_call.1} parent=1 // pred_fallthru
      _
    // Predicated region
    $region18: #{tpu_custom_call.1} parent=1 // pred_check
      _
    $region19: #{tpu_custom_call.1} parent=1 // pred_check_branch
      %41 = sbr.rel (0) target = $region21
    $region20: #{tpu_custom_call.1} parent=1 // pred_region
      %s43 = ssub.s32 512, 512
      %44 = vsyncadd [#allocation6], %s43
      %s45 = sshll.u32 [#allocation5], 4
      %s46 = int_to_ptr.vmem [resolvable:$true] %s45
      %51 = dma.hbm_to_vmem [thread:$0]  %s4, 512, %s46, [#allocation6], 128, 128, 8
    $region21: #{tpu_custom_call.1} parent=1 // pred_fallthru
      _
    // Predicated region
    $region22: #{tpu_custom_call.1} parent=1 // pred_check
      _
    $region23: #{tpu_custom_call.1} parent=1 // pred_check_branch
      %53 = sbr.rel (0) target = $region25
    $region24: #{tpu_custom_call.1} parent=1 // pred_region
      _
    $region25: #{tpu_custom_call.1} parent=1 // pred_fallthru
      _
    // Predicated region
    $region26: #{tpu_custom_call.1} parent=1 // pred_check
      _
    $region27: #{tpu_custom_call.1} parent=1 // pred_check_branch
      %55 = sbr.rel (0) target = $region29
    $region28: #{tpu_custom_call.1} parent=1 // pred_region
      _
    $region29: #{tpu_custom_call.1} parent=1 // pred_fallthru
      _
    // Predicated region
    $region30: #{tpu_custom_call.1} parent=1 // pred_check
      _
    $region31: #{tpu_custom_call.1} parent=1 // pred_check_branch
      %57 = sbr.rel (0) target = $region33
    $region32: #{tpu_custom_call.1} parent=1 // pred_region
      _
    $region33: #{tpu_custom_call.1} parent=1 // pred_fallthru
      _
    // Predicated region
    $region34: #{tpu_custom_call.1} parent=1 // pred_check
      _
    $region35: #{tpu_custom_call.1} parent=1 // pred_check_branch
      %59 = sbr.rel (0) target = $region37
    $region36: #{tpu_custom_call.1} parent=1 // pred_region
      %s61 = ssub.s32 512, 512
      %62 = vsyncadd [#allocation6], %s61
      %s63 = sshll.u32 [#allocation7], 4
      %s64 = int_to_ptr.vmem [resolvable:$true] %s63
      %69 = dma.hbm_to_vmem [thread:$0]  %s8, 512, %s64, [#allocation6], 128, 128, 8
    $region37: #{tpu_custom_call.1} parent=1 // pred_fallthru
      _
    // Predicated region
    $region38: #{tpu_custom_call.1} parent=1 // pred_check
      _
    $region39: #{tpu_custom_call.1} parent=1 // pred_check_branch
      %71 = sbr.rel (0) target = $region41
    $region40: #{tpu_custom_call.1} parent=1 // pred_region
      _
    $region41: #{tpu_custom_call.1} parent=1 // pred_fallthru
      _
    // Predicated region
    $region42: #{tpu_custom_call.1} parent=1 // pred_check
      _
    $region43: #{tpu_custom_call.1} parent=1 // pred_check_branch
      %73 = sbr.rel (0) target = $region45
    $region44: #{tpu_custom_call.1} parent=1 // pred_region
      _
    $region45: #{tpu_custom_call.1} parent=1 // pred_fallthru
      _
    // Predicated region
    $region46: #{tpu_custom_call.1} parent=1 // pred_check
      _
    $region47: #{tpu_custom_call.1} parent=1 // pred_check_branch
      %75 = sbr.rel (0) target = $region49
    $region48: #{tpu_custom_call.1} parent=1 // pred_region
      _
    $region49: #{tpu_custom_call.1} parent=1 // pred_fallthru
      _
    // Predicated region
    $region50: #{tpu_custom_call.1} parent=1 // pred_check
      _
    $region51: #{tpu_custom_call.1} parent=1 // pred_check_branch
      %77 = sbr.rel (0) target = $region53
    $region52: #{tpu_custom_call.1} parent=1 // pred_region
      _
    $region53: #{tpu_custom_call.1} parent=1 // pred_fallthru
      _
    // Predicated region
    $region54: #{tpu_custom_call.1} parent=1 // pred_check
      _
    $region55: #{tpu_custom_call.1} parent=1 // pred_check_branch
      %79 = sbr.rel (0) target = $region57
    $region56: #{tpu_custom_call.1} parent=1 // pred_region
      _
    $region57: #{tpu_custom_call.1} parent=1 // pred_fallthru
      _
    // Predicated region
    $region58: #{tpu_custom_call.1} parent=1 // pred_check
      _
    $region59: #{tpu_custom_call.1} parent=1 // pred_check_branch
      %81 = sbr.rel (0) target = $region61
    $region60: #{tpu_custom_call.1} parent=1 // pred_region
      %82 = dma.done [#allocation3], 256
    $region61: #{tpu_custom_call.1} parent=1 // pred_fallthru
      _
    // Predicated region
    $region62: #{tpu_custom_call.1} parent=1 // pred_check
      _
    $region63: #{tpu_custom_call.1} parent=1 // pred_check_branch
      %84 = sbr.rel (0) target = $region65
    $region64: #{tpu_custom_call.1} parent=1 // pred_region
      %85 = dma.done [#allocation6], 512
    $region65: #{tpu_custom_call.1} parent=1 // pred_fallthru
      _
    // Predicated region
    $region66: #{tpu_custom_call.1} parent=1 // pred_check
      _
    $region67: #{tpu_custom_call.1} parent=1 // pred_check_branch
      %87 = sbr.rel (0) target = $region69
    $region68: #{tpu_custom_call.1} parent=1 // pred_region
      %88 = dma.done [#allocation6], 512
    $region69: #{tpu_custom_call.1} parent=1 // pred_fallthru
      _
    %v89 = vld [vmem:[#allocation2] sm:$0xff]
    %v90 = vld [vmem:[#allocation2 + $0x8] sm:$0xff]
    %v91 = vld [vmem:[%s1] sm:$0xff]
    %v92 = vld [vmem:[%s1 + $0x8] sm:$0xff]
    %v93 = vld [vmem:[%s1 + $0x10] sm:$0xff]
    %v94 = vld [vmem:[%s1 + $0x18] sm:$0xff]
    %vm95 = vcmask 261120
    %v97 = vsel %vm95, %v89, 0
    %v100 = vsel %vm95, %v90, 0
    %102 = vmatprep.subr.mxu0 0.0
    %103 = vmatpush1.msra.mxu0 %v91
    %104 = vmatprep.subr.mxu0 0.0
    %105 = vmatpush1.msra.mxu0 %v92
    %106 = vmatprep.subr.mxu0 0.0
    %107 = vmatpush1.msra.mxu0 %v93
    %108 = vmatprep.subr.mxu0 0.0
    %109 = vmatpush1.msra.mxu0 %v94
    %110 = vmatprep.subr.mxu0 0.0
    %111 = vmatpush1.msra.mxu0 0.0
    %112 = vmatprep.subr.mxu0 0.0
    %113 = vmatpush1.msra.mxu0 0.0
    %114 = vmatprep.subr.mxu0 0.0
    %115 = vmatpush1.msra.mxu0 0.0
    %116 = vmatprep.subr.mxu0 0.0
    %117 = vmatpush1.msra.mxu0 0.0
    %118 = vmatprep.subr.mxu0 0.0
    %119 = vmatpush1.msra.mxu0 0.0
    %120 = vmatprep.subr.mxu0 0.0
    %121 = vmatpush1.msra.mxu0 0.0
    %122 = vmatprep.subr.mxu0 0.0
    %123 = vmatpush1.msra.mxu0 0.0
    %124 = vmatprep.subr.mxu0 0.0
    %125 = vmatpush1.msra.mxu0 0.0
    %126 = vmatprep.subr.mxu0 0.0
    %127 = vmatpush1.msra.mxu0 0.0
    %128 = vmatprep.subr.mxu0 0.0
    %129 = vmatpush1.msra.mxu0 0.0
    %130 = vmatprep.subr.mxu0 0.0
    %131 = vmatpush1.msra.mxu0 0.0
    %132 = vmatprep.subr.mxu0 0.0
    %133 = vmatpush1.msra.mxu0 0.0
    %134 = vmatprep.subr.mxu0 0.0
    %135 = vmatpush1.msra.mxu0 0.0
    %136 = vmatprep.subr.mxu0 0.0
    %137 = vmatpush1.msra.mxu0 0.0
    %138 = vmatprep.subr.mxu0 0.0
    %139 = vmatpush1.msra.mxu0 0.0
    %140 = vmatprep.subr.mxu0 0.0
    %141 = vmatpush1.msra.mxu0 0.0
    %142 = vmatprep.subr.mxu0 0.0
    %143 = vmatpush1.msra.mxu0 0.0
    %144 = vmatprep.subr.mxu0 0.0
    %145 = vmatpush1.msra.mxu0 0.0
    %146 = vmatprep.subr.mxu0 0.0
    %147 = vmatpush1.msra.mxu0 0.0
    %148 = vmatprep.subr.mxu0 0.0
    %149 = vmatpush1.msra.mxu0 0.0
    %150 = vmatprep.subr.mxu0 0.0
    %151 = vmatpush1.msra.mxu0 0.0
    %152 = vmatprep.subr.mxu0 0.0
    %153 = vmatpush1.msra.mxu0 0.0
    %154 = vmatprep.subr.mxu0 0.0
    %155 = vmatpush1.msra.mxu0 0.0
    %156 = vmatprep.subr.mxu0 0.0
    %157 = vmatpush1.msra.mxu0 0.0
    %158 = vmatprep.subr.mxu0 0.0
    %159 = vmatpush1.msra.mxu0 0.0
    %160 = vmatprep.subr.mxu0 0.0
    %161 = vmatpush1.msra.mxu0 0.0
    %162 = vmatprep.subr.mxu0 0.0
    %163 = vmatpush1.msra.mxu0 0.0
    %164 = vmatprep.subr.mxu0 0.0
    %165 = vmatpush1.msra.mxu0 0.0
    %166 = vmatprep.mubr.f32.mxu0 0.0
    %167 = vmatmul.mubr.f32.gmra.mrb[0].mxu0 %v97
    %v168 = vpop.f32.mrb[0].mxu0
    %v169 = vadd.f32 0.0, %v168
    %v170 = vpop.f32.mrb[0].mxu0
    %171 = vmatprep.mubr.f32.mxu0 0.0
    %172 = vmatmul.mubr.f32.gmra.mrb[0].mxu0 %v100
    %v173 = vpop.f32.mrb[0].mxu0
    %v174 = vadd.f32 0.0, %v173
    %v175 = vpop.f32.mrb[0].mxu0
    %176 = vdwg.mxu0
    %v177 = vmul.f32 %v169, 0.17677669
    %v178 = vmul.f32 %v174, 0.17677669
    %v179 = vld [vmem:[%s2] sm:$0xff]
    %v180 = vld [vmem:[%s2 + $0x8] sm:$0xff]
    %v181 = vld [vmem:[%s2 + $0x10] sm:$0xff]
    %v182 = vld [vmem:[%s2 + $0x18] sm:$0xff]
    %183 = vmatprep.subr.mxu0 0.0
    %184 = vmatpush1.msra.mxu0 %v179
    %185 = vmatprep.subr.mxu0 0.0
    %186 = vmatpush1.msra.mxu0 %v180
    %187 = vmatprep.subr.mxu0 0.0
    %188 = vmatpush1.msra.mxu0 %v181
    %189 = vmatprep.subr.mxu0 0.0
    %190 = vmatpush1.msra.mxu0 %v182
    %191 = vmatprep.subr.mxu0 0.0
    %192 = vmatpush1.msra.mxu0 0.0
    %193 = vmatprep.subr.mxu0 0.0
    %194 = vmatpush1.msra.mxu0 0.0
    %195 = vmatprep.subr.mxu0 0.0
    %196 = vmatpush1.msra.mxu0 0.0
    %197 = vmatprep.subr.mxu0 0.0
    %198 = vmatpush1.msra.mxu0 0.0
    %199 = vmatprep.subr.mxu0 0.0
    %200 = vmatpush1.msra.mxu0 0.0
    %201 = vmatprep.subr.mxu0 0.0
    %202 = vmatpush1.msra.mxu0 0.0
    %203 = vmatprep.subr.mxu0 0.0
    %204 = vmatpush1.msra.mxu0 0.0
    %205 = vmatprep.subr.mxu0 0.0
    %206 = vmatpush1.msra.mxu0 0.0
    %207 = vmatprep.subr.mxu0 0.0
    %208 = vmatpush1.msra.mxu0 0.0
    %209 = vmatprep.subr.mxu0 0.0
    %210 = vmatpush1.msra.mxu0 0.0
    %211 = vmatprep.subr.mxu0 0.0
    %212 = vmatpush1.msra.mxu0 0.0
    %213 = vmatprep.subr.mxu0 0.0
    %214 = vmatpush1.msra.mxu0 0.0
    %215 = vmatprep.subr.mxu0 0.0
    %216 = vmatpush1.msra.mxu0 0.0
    %217 = vmatprep.subr.mxu0 0.0
    %218 = vmatpush1.msra.mxu0 0.0
    %219 = vmatprep.subr.mxu0 0.0
    %220 = vmatpush1.msra.mxu0 0.0
    %221 = vmatprep.subr.mxu0 0.0
    %222 = vmatpush1.msra.mxu0 0.0
    %223 = vmatprep.subr.mxu0 0.0
    %224 = vmatpush1.msra.mxu0 0.0
    %225 = vmatprep.subr.mxu0 0.0
    %226 = vmatpush1.msra.mxu0 0.0
    %227 = vmatprep.subr.mxu0 0.0
    %228 = vmatpush1.msra.mxu0 0.0
    %229 = vmatprep.subr.mxu0 0.0
    %230 = vmatpush1.msra.mxu0 0.0
    %231 = vmatprep.subr.mxu0 0.0
    %232 = vmatpush1.msra.mxu0 0.0
    %233 = vmatprep.subr.mxu0 0.0
    %234 = vmatpush1.msra.mxu0 0.0
    %235 = vmatprep.subr.mxu0 0.0
    %236 = vmatpush1.msra.mxu0 0.0
    %237 = vmatprep.subr.mxu0 0.0
    %238 = vmatpush1.msra.mxu0 0.0
    %239 = vmatprep.subr.mxu0 0.0
    %240 = vmatpush1.msra.mxu0 0.0
    %241 = vmatprep.subr.mxu0 0.0
    %242 = vmatpush1.msra.mxu0 0.0
    %243 = vmatprep.subr.mxu0 0.0
    %244 = vmatpush1.msra.mxu0 0.0
    %245 = vmatprep.subr.mxu0 0.0
    %246 = vmatpush1.msra.mxu0 0.0
    %247 = vmatprep.mubr.f32.mxu0 0.0
    %248 = vmatmul.mubr.f32.gmra.mrb[0].mxu0 %v97
    %v249 = vpop.f32.mrb[0].mxu0
    %v250 = vadd.f32 0.0, %v249
    %v251 = vpop.f32.mrb[0].mxu0
    %252 = vmatprep.mubr.f32.mxu0 0.0
    %253 = vmatmul.mubr.f32.gmra.mrb[0].mxu0 %v100
    %v254 = vpop.f32.mrb[0].mxu0
    %v255 = vadd.f32 0.0, %v254
    %v256 = vpop.f32.mrb[0].mxu0
    %257 = vdwg.mxu0
    %v258 = vld [vmem:[%s3] sm:$0xff]
    %v259 = vld [vmem:[%s3 + $0x8] sm:$0xff]
    %v260 = vld [vmem:[%s3 + $0x10] sm:$0xff]
    %v261 = vld [vmem:[%s3 + $0x18] sm:$0xff]
    %262 = vmatprep.subr.mxu0 0.0
    %263 = vmatpush1.msra.mxu0 %v258
    %264 = vmatprep.subr.mxu0 0.0
    %265 = vmatpush1.msra.mxu0 %v259
    %266 = vmatprep.subr.mxu0 0.0
    %267 = vmatpush1.msra.mxu0 %v260
    %268 = vmatprep.subr.mxu0 0.0
    %269 = vmatpush1.msra.mxu0 %v261
    %270 = vmatprep.subr.mxu0 0.0
    %271 = vmatpush1.msra.mxu0 0.0
    %272 = vmatprep.subr.mxu0 0.0
    %273 = vmatpush1.msra.mxu0 0.0
    %274 = vmatprep.subr.mxu0 0.0
    %275 = vmatpush1.msra.mxu0 0.0
    %276 = vmatprep.subr.mxu0 0.0
    %277 = vmatpush1.msra.mxu0 0.0
    %278 = vmatprep.subr.mxu0 0.0
    %279 = vmatpush1.msra.mxu0 0.0
    %280 = vmatprep.subr.mxu0 0.0
    %281 = vmatpush1.msra.mxu0 0.0
    %282 = vmatprep.subr.mxu0 0.0
    %283 = vmatpush1.msra.mxu0 0.0
    %284 = vmatprep.subr.mxu0 0.0
    %285 = vmatpush1.msra.mxu0 0.0
    %286 = vmatprep.subr.mxu0 0.0
    %287 = vmatpush1.msra.mxu0 0.0
    %288 = vmatprep.subr.mxu0 0.0
    %289 = vmatpush1.msra.mxu0 0.0
    %290 = vmatprep.subr.mxu0 0.0
    %291 = vmatpush1.msra.mxu0 0.0
    %292 = vmatprep.subr.mxu0 0.0
    %293 = vmatpush1.msra.mxu0 0.0
    %294 = vmatprep.subr.mxu0 0.0
    %295 = vmatpush1.msra.mxu0 0.0
    %296 = vmatprep.subr.mxu0 0.0
    %297 = vmatpush1.msra.mxu0 0.0
    %298 = vmatprep.subr.mxu0 0.0
    %299 = vmatpush1.msra.mxu0 0.0
    %300 = vmatprep.subr.mxu0 0.0
    %301 = vmatpush1.msra.mxu0 0.0
    %302 = vmatprep.subr.mxu0 0.0
    %303 = vmatpush1.msra.mxu0 0.0
    %304 = vmatprep.subr.mxu0 0.0
    %305 = vmatpush1.msra.mxu0 0.0
    %306 = vmatprep.subr.mxu0 0.0
    %307 = vmatpush1.msra.mxu0 0.0
    %308 = vmatprep.subr.mxu0 0.0
    %309 = vmatpush1.msra.mxu0 0.0
    %310 = vmatprep.subr.mxu0 0.0
    %311 = vmatpush1.msra.mxu0 0.0
    %312 = vmatprep.subr.mxu0 0.0
    %313 = vmatpush1.msra.mxu0 0.0
    %314 = vmatprep.subr.mxu0 0.0
    %315 = vmatpush1.msra.mxu0 0.0
    %316 = vmatprep.subr.mxu0 0.0
    %317 = vmatpush1.msra.mxu0 0.0
    %318 = vmatprep.subr.mxu0 0.0
    %319 = vmatpush1.msra.mxu0 0.0
    %320 = vmatprep.subr.mxu0 0.0
    %321 = vmatpush1.msra.mxu0 0.0
    %322 = vmatprep.subr.mxu0 0.0
    %323 = vmatpush1.msra.mxu0 0.0
    %324 = vmatprep.subr.mxu0 0.0
    %325 = vmatpush1.msra.mxu0 0.0
    %326 = vmatprep.mubr.f32.mxu0 0.0
    %327 = vmatmul.mubr.f32.gmra.mrb[0].mxu0 %v97
    %v328 = vpop.f32.mrb[0].mxu0
    %v329 = vadd.f32 0.0, %v328
    %v330 = vpop.f32.mrb[0].mxu0
    %331 = vmatprep.mubr.f32.mxu0 0.0
    %332 = vmatmul.mubr.f32.gmra.mrb[0].mxu0 %v100
    %v333 = vpop.f32.mrb[0].mxu0
    %v334 = vadd.f32 0.0, %v333
    %v335 = vpop.f32.mrb[0].mxu0
    %336 = vdwg.mxu0
    %vm337 = vcmask 64512
    %v339 = vsel %vm337, %v177, 0
    %v342 = vsel %vm337, %v250, 0
    %344 = vmatprep.subr.mxu0 0.0
    %345 = vmatpush1.xpose.msra.mxu0 %v342
    %346 = vmatprep.subr.mxu0 0.0
    %347 = vmatpush1.xpose.msra.mxu0 0.0
    %348 = vmatprep.subr.mxu0 0.0
    %349 = vmatpush1.xpose.msra.mxu0 0.0
    %350 = vmatprep.subr.mxu0 0.0
    %351 = vmatpush1.xpose.msra.mxu0 0.0
    %352 = vmatprep.subr.mxu0 0.0
    %353 = vmatpush1.xpose.msra.mxu0 0.0
    %354 = vmatprep.subr.mxu0 0.0
    %355 = vmatpush1.xpose.msra.mxu0 0.0
    %356 = vmatprep.subr.mxu0 0.0
    %357 = vmatpush1.xpose.msra.mxu0 0.0
    %358 = vmatprep.subr.mxu0 0.0
    %359 = vmatpush1.xpose.msra.mxu0 0.0
    %360 = vmatprep.subr.mxu0 0.0
    %361 = vmatpush1.xpose.msra.mxu0 0.0
    %362 = vmatprep.subr.mxu0 0.0
    %363 = vmatpush1.xpose.msra.mxu0 0.0
    %364 = vmatprep.subr.mxu0 0.0
    %365 = vmatpush1.xpose.msra.mxu0 0.0
    %366 = vmatprep.subr.mxu0 0.0
    %367 = vmatpush1.xpose.msra.mxu0 0.0
    %368 = vmatprep.subr.mxu0 0.0
    %369 = vmatpush1.xpose.msra.mxu0 0.0
    %370 = vmatprep.subr.mxu0 0.0
    %371 = vmatpush1.xpose.msra.mxu0 0.0
    %372 = vmatprep.subr.mxu0 0.0
    %373 = vmatpush1.xpose.msra.mxu0 0.0
    %374 = vmatprep.subr.mxu0 0.0
    %375 = vmatpush1.xpose.msra.mxu0 0.0
    %376 = vmatprep.subr.mxu0 0.0
    %377 = vmatpush1.xpose.msra.mxu0 0.0
    %378 = vmatprep.subr.mxu0 0.0
    %379 = vmatpush1.xpose.msra.mxu0 0.0
    %380 = vmatprep.subr.mxu0 0.0
    %381 = vmatpush1.xpose.msra.mxu0 0.0
    %382 = vmatprep.subr.mxu0 0.0
    %383 = vmatpush1.xpose.msra.mxu0 0.0
    %384 = vmatprep.subr.mxu0 0.0
    %385 = vmatpush1.xpose.msra.mxu0 0.0
    %386 = vmatprep.subr.mxu0 0.0
    %387 = vmatpush1.xpose.msra.mxu0 0.0
    %388 = vmatprep.subr.mxu0 0.0
    %389 = vmatpush1.xpose.msra.mxu0 0.0
    %390 = vmatprep.subr.mxu0 0.0
    %391 = vmatpush1.xpose.msra.mxu0 0.0
    %392 = vmatprep.subr.mxu0 0.0
    %393 = vmatpush1.xpose.msra.mxu0 0.0
    %394 = vmatprep.subr.mxu0 0.0
    %395 = vmatpush1.xpose.msra.mxu0 0.0
    %396 = vmatprep.subr.mxu0 0.0
    %397 = vmatpush1.xpose.msra.mxu0 0.0
    %398 = vmatprep.subr.mxu0 0.0
    %399 = vmatpush1.xpose.msra.mxu0 0.0
    %400 = vmatprep.subr.mxu0 0.0
    %401 = vmatpush1.xpose.msra.mxu0 0.0
    %402 = vmatprep.subr.mxu0 0.0
    %403 = vmatpush1.xpose.msra.mxu0 0.0
    %404 = vmatprep.subr.mxu0 0.0
    %405 = vmatpush1.xpose.msra.mxu0 0.0
    %406 = vmatprep.subr.mxu0 0.0
    %407 = vmatpush1.xpose.msra.mxu0 0.0
    %408 = vmatprep.mubr.f32.mxu0 0.0
    %409 = vmatmul.mubr.f32.gmra.mrb[0].mxu0 %v339
    %v410 = vpop.f32.mrb[0].mxu0
    %v411 = vadd.f32 0.0, %v410
    %v412 = vpop.f32.mrb[0].mxu0
    %413 = vdwg.mxu0
    %v414 = vsel %vm337, %v411, -inf
    %415 = vmax.xlane.f32.xlu0 %v414
    %v416 = vpop.xlane.xlu0 %415
    %v417 = vsub.f32 %v411, %v416
    %v418 = vmul.f32 %v417, 1.442695
    %v419 = vpow.pop %v418
    %v420 = vsel %vm337, %v419, 0.0
    %421 = vadd.xlane.f32.xlu0 %v420
    %v422 = vpop.xlane.xlu0 %421
    %v423 = vrcp.pop %v422
    %v424 = vmul.f32 %v419, %v423
    %v426 = vsel %vm337, %v424, 0
    %428 = vmatprep.subr.mxu0 0.0
    %429 = vmatpush1.msra.mxu0 %v329
    %430 = vmatprep.subr.mxu0 0.0
    %431 = vmatpush1.msra.mxu0 0.0
    %432 = vmatprep.subr.mxu0 0.0
    %433 = vmatpush1.msra.mxu0 0.0
    %434 = vmatprep.subr.mxu0 0.0
    %435 = vmatpush1.msra.mxu0 0.0
    %436 = vmatprep.subr.mxu0 0.0
    %437 = vmatpush1.msra.mxu0 0.0
    %438 = vmatprep.subr.mxu0 0.0
    %439 = vmatpush1.msra.mxu0 0.0
    %440 = vmatprep.subr.mxu0 0.0
    %441 = vmatpush1.msra.mxu0 0.0
    %442 = vmatprep.subr.mxu0 0.0
    %443 = vmatpush1.msra.mxu0 0.0
    %444 = vmatprep.subr.mxu0 0.0
    %445 = vmatpush1.msra.mxu0 0.0
    %446 = vmatprep.subr.mxu0 0.0
    %447 = vmatpush1.msra.mxu0 0.0
    %448 = vmatprep.subr.mxu0 0.0
    %449 = vmatpush1.msra.mxu0 0.0
    %450 = vmatprep.subr.mxu0 0.0
    %451 = vmatpush1.msra.mxu0 0.0
    %452 = vmatprep.subr.mxu0 0.0
    %453 = vmatpush1.msra.mxu0 0.0
    %454 = vmatprep.subr.mxu0 0.0
    %455 = vmatpush1.msra.mxu0 0.0
    %456 = vmatprep.subr.mxu0 0.0
    %457 = vmatpush1.msra.mxu0 0.0
    %458 = vmatprep.subr.mxu0 0.0
    %459 = vmatpush1.msra.mxu0 0.0
    %460 = vmatprep.subr.mxu0 0.0
    %461 = vmatpush1.msra.mxu0 0.0
    %462 = vmatprep.subr.mxu0 0.0
    %463 = vmatpush1.msra.mxu0 0.0
    %464 = vmatprep.subr.mxu0 0.0
    %465 = vmatpush1.msra.mxu0 0.0
    %466 = vmatprep.subr.mxu0 0.0
    %467 = vmatpush1.msra.mxu0 0.0
    %468 = vmatprep.subr.mxu0 0.0
    %469 = vmatpush1.msra.mxu0 0.0
    %470 = vmatprep.subr.mxu0 0.0
    %471 = vmatpush1.msra.mxu0 0.0
    %472 = vmatprep.subr.mxu0 0.0
    %473 = vmatpush1.msra.mxu0 0.0
    %474 = vmatprep.subr.mxu0 0.0
    %475 = vmatpush1.msra.mxu0 0.0
    %476 = vmatprep.subr.mxu0 0.0
    %477 = vmatpush1.msra.mxu0 0.0
    %478 = vmatprep.subr.mxu0 0.0
    %479 = vmatpush1.msra.mxu0 0.0
    %480 = vmatprep.subr.mxu0 0.0
    %481 = vmatpush1.msra.mxu0 0.0
    %482 = vmatprep.subr.mxu0 0.0
    %483 = vmatpush1.msra.mxu0 0.0
    %484 = vmatprep.subr.mxu0 0.0
    %485 = vmatpush1.msra.mxu0 0.0
    %486 = vmatprep.subr.mxu0 0.0
    %487 = vmatpush1.msra.mxu0 0.0
    %488 = vmatprep.subr.mxu0 0.0
    %489 = vmatpush1.msra.mxu0 0.0
    %490 = vmatprep.subr.mxu0 0.0
    %491 = vmatpush1.msra.mxu0 0.0
    %492 = vmatprep.mubr.f32.mxu0 0.0
    %493 = vmatmul.mubr.f32.gmra.mrb[0].mxu0 %v426
    %v494 = vpop.f32.mrb[0].mxu0
    %v495 = vadd.f32 0.0, %v494
    %v496 = vpop.f32.mrb[0].mxu0
    %497 = vdwg.mxu0
    %498 = vrot.lane.b32.xlu0 %v177, 120
    %v499 = vpop.permute.xlu0 %498
    %500 = vrot.lane.b32.xlu0 %v250, 120
    %v501 = vpop.permute.xlu0 %500
    %v502 = vsel %vm337, %v499, 0
    %v504 = vsel %vm337, %v501, 0
    %506 = vmatprep.subr.mxu0 0.0
    %507 = vmatpush1.xpose.msra.mxu0 %v504
    %508 = vmatprep.subr.mxu0 0.0
    %509 = vmatpush1.xpose.msra.mxu0 0.0
    %510 = vmatprep.subr.mxu0 0.0
    %511 = vmatpush1.xpose.msra.mxu0 0.0
    %512 = vmatprep.subr.mxu0 0.0
    %513 = vmatpush1.xpose.msra.mxu0 0.0
    %514 = vmatprep.subr.mxu0 0.0
    %515 = vmatpush1.xpose.msra.mxu0 0.0
    %516 = vmatprep.subr.mxu0 0.0
    %517 = vmatpush1.xpose.msra.mxu0 0.0
    %518 = vmatprep.subr.mxu0 0.0
    %519 = vmatpush1.xpose.msra.mxu0 0.0
    %520 = vmatprep.subr.mxu0 0.0
    %521 = vmatpush1.xpose.msra.mxu0 0.0
    %522 = vmatprep.subr.mxu0 0.0
    %523 = vmatpush1.xpose.msra.mxu0 0.0
    %524 = vmatprep.subr.mxu0 0.0
    %525 = vmatpush1.xpose.msra.mxu0 0.0
    %526 = vmatprep.subr.mxu0 0.0
    %527 = vmatpush1.xpose.msra.mxu0 0.0
    %528 = vmatprep.subr.mxu0 0.0
    %529 = vmatpush1.xpose.msra.mxu0 0.0
    %530 = vmatprep.subr.mxu0 0.0
    %531 = vmatpush1.xpose.msra.mxu0 0.0
    %532 = vmatprep.subr.mxu0 0.0
    %533 = vmatpush1.xpose.msra.mxu0 0.0
    %534 = vmatprep.subr.mxu0 0.0
    %535 = vmatpush1.xpose.msra.mxu0 0.0
    %536 = vmatprep.subr.mxu0 0.0
    %537 = vmatpush1.xpose.msra.mxu0 0.0
    %538 = vmatprep.subr.mxu0 0.0
    %539 = vmatpush1.xpose.msra.mxu0 0.0
    %540 = vmatprep.subr.mxu0 0.0
    %541 = vmatpush1.xpose.msra.mxu0 0.0
    %542 = vmatprep.subr.mxu0 0.0
    %543 = vmatpush1.xpose.msra.mxu0 0.0
    %544 = vmatprep.subr.mxu0 0.0
    %545 = vmatpush1.xpose.msra.mxu0 0.0
    %546 = vmatprep.subr.mxu0 0.0
    %547 = vmatpush1.xpose.msra.mxu0 0.0
    %548 = vmatprep.subr.mxu0 0.0
    %549 = vmatpush1.xpose.msra.mxu0 0.0
    %550 = vmatprep.subr.mxu0 0.0
    %551 = vmatpush1.xpose.msra.mxu0 0.0
    %552 = vmatprep.subr.mxu0 0.0
    %553 = vmatpush1.xpose.msra.mxu0 0.0
    %554 = vmatprep.subr.mxu0 0.0
    %555 = vmatpush1.xpose.msra.mxu0 0.0
    %556 = vmatprep.subr.mxu0 0.0
    %557 = vmatpush1.xpose.msra.mxu0 0.0
    %558 = vmatprep.subr.mxu0 0.0
    %559 = vmatpush1.xpose.msra.mxu0 0.0
    %560 = vmatprep.subr.mxu0 0.0
    %561 = vmatpush1.xpose.msra.mxu0 0.0
    %562 = vmatprep.subr.mxu0 0.0
    %563 = vmatpush1.xpose.msra.mxu0 0.0
    %564 = vmatprep.subr.mxu0 0.0
    %565 = vmatpush1.xpose.msra.mxu0 0.0
    %566 = vmatprep.subr.mxu0 0.0
    %567 = vmatpush1.xpose.msra.mxu0 0.0
    %568 = vmatprep.subr.mxu0 0.0
    %569 = vmatpush1.xpose.msra.mxu0 0.0
    %570 = vmatprep.mubr.f32.mxu0 0.0
    %571 = vmatmul.mubr.f32.gmra.mrb[0].mxu0 %v502
    %v572 = vpop.f32.mrb[0].mxu0
    %v573 = vadd.f32 0.0, %v572
    %v574 = vpop.f32.mrb[0].mxu0
    %575 = vdwg.mxu0
    %v576 = vsel %vm337, %v573, -inf
    %577 = vmax.xlane.f32.xlu0 %v576
    %v578 = vpop.xlane.xlu0 %577
    %v579 = vsub.f32 %v573, %v578
    %v580 = vmul.f32 %v579, 1.442695
    %v581 = vpow.pop %v580
    %v582 = vsel %vm337, %v581, 0.0
    %583 = vadd.xlane.f32.xlu0 %v582
    %v584 = vpop.xlane.xlu0 %583
    %v585 = vrcp.pop %v584
    %v586 = vmul.f32 %v581, %v585
    %588 = vrot.lane.b32.xlu0 %v329, 120
    %v589 = vpop.permute.xlu0 %588
    %v592 = vsel %vm337, %v586, 0
    %594 = vmatprep.subr.mxu0 0.0
    %595 = vmatpush1.msra.mxu0 %v589
    %596 = vmatprep.subr.mxu0 0.0
    %597 = vmatpush1.msra.mxu0 0.0
    %598 = vmatprep.subr.mxu0 0.0
    %599 = vmatpush1.msra.mxu0 0.0
    %600 = vmatprep.subr.mxu0 0.0
    %601 = vmatpush1.msra.mxu0 0.0
    %602 = vmatprep.subr.mxu0 0.0
    %603 = vmatpush1.msra.mxu0 0.0
    %604 = vmatprep.subr.mxu0 0.0
    %605 = vmatpush1.msra.mxu0 0.0
    %606 = vmatprep.subr.mxu0 0.0
    %607 = vmatpush1.msra.mxu0 0.0
    %608 = vmatprep.subr.mxu0 0.0
    %609 = vmatpush1.msra.mxu0 0.0
    %610 = vmatprep.subr.mxu0 0.0
    %611 = vmatpush1.msra.mxu0 0.0
    %612 = vmatprep.subr.mxu0 0.0
    %613 = vmatpush1.msra.mxu0 0.0
    %614 = vmatprep.subr.mxu0 0.0
    %615 = vmatpush1.msra.mxu0 0.0
    %616 = vmatprep.subr.mxu0 0.0
    %617 = vmatpush1.msra.mxu0 0.0
    %618 = vmatprep.subr.mxu0 0.0
    %619 = vmatpush1.msra.mxu0 0.0
    %620 = vmatprep.subr.mxu0 0.0
    %621 = vmatpush1.msra.mxu0 0.0
    %622 = vmatprep.subr.mxu0 0.0
    %623 = vmatpush1.msra.mxu0 0.0
    %624 = vmatprep.subr.mxu0 0.0
    %625 = vmatpush1.msra.mxu0 0.0
    %626 = vmatprep.subr.mxu0 0.0
    %627 = vmatpush1.msra.mxu0 0.0
    %628 = vmatprep.subr.mxu0 0.0
    %629 = vmatpush1.msra.mxu0 0.0
    %630 = vmatprep.subr.mxu0 0.0
    %631 = vmatpush1.msra.mxu0 0.0
    %632 = vmatprep.subr.mxu0 0.0
    %633 = vmatpush1.msra.mxu0 0.0
    %634 = vmatprep.subr.mxu0 0.0
    %635 = vmatpush1.msra.mxu0 0.0
    %636 = vmatprep.subr.mxu0 0.0
    %637 = vmatpush1.msra.mxu0 0.0
    %638 = vmatprep.subr.mxu0 0.0
    %639 = vmatpush1.msra.mxu0 0.0
    %640 = vmatprep.subr.mxu0 0.0
    %641 = vmatpush1.msra.mxu0 0.0
    %642 = vmatprep.subr.mxu0 0.0
    %643 = vmatpush1.msra.mxu0 0.0
    %644 = vmatprep.subr.mxu0 0.0
    %645 = vmatpush1.msra.mxu0 0.0
    %646 = vmatprep.subr.mxu0 0.0
    %647 = vmatpush1.msra.mxu0 0.0
    %648 = vmatprep.subr.mxu0 0.0
    %649 = vmatpush1.msra.mxu0 0.0
    %650 = vmatprep.subr.mxu0 0.0
    %651 = vmatpush1.msra.mxu0 0.0
    %652 = vmatprep.subr.mxu0 0.0
    %653 = vmatpush1.msra.mxu0 0.0
    %654 = vmatprep.subr.mxu0 0.0
    %655 = vmatpush1.msra.mxu0 0.0
    %656 = vmatprep.subr.mxu0 0.0
    %657 = vmatpush1.msra.mxu0 0.0
    %658 = vmatprep.mubr.f32.mxu0 0.0
    %659 = vmatmul.mubr.f32.gmra.mrb[0].mxu0 %v592
    %v660 = vpop.f32.mrb[0].mxu0
    %v661 = vadd.f32 0.0, %v660
    %v662 = vpop.f32.mrb[0].mxu0
    %663 = vdwg.mxu0
    %664 = vrot.lane.b32.xlu0 %v177, 112
    %v665 = vpop.permute.xlu0 %664
    %666 = vrot.lane.b32.xlu0 %v250, 112
    %v667 = vpop.permute.xlu0 %666
    %v668 = vsel %vm337, %v665, 0
    %v670 = vsel %vm337, %v667, 0
    %672 = vmatprep.subr.mxu0 0.0
    %673 = vmatpush1.xpose.msra.mxu0 %v670
    %674 = vmatprep.subr.mxu0 0.0
    %675 = vmatpush1.xpose.msra.mxu0 0.0
    %676 = vmatprep.subr.mxu0 0.0
    %677 = vmatpush1.xpose.msra.mxu0 0.0
    %678 = vmatprep.subr.mxu0 0.0
    %679 = vmatpush1.xpose.msra.mxu0 0.0
    %680 = vmatprep.subr.mxu0 0.0
    %681 = vmatpush1.xpose.msra.mxu0 0.0
    %682 = vmatprep.subr.mxu0 0.0
    %683 = vmatpush1.xpose.msra.mxu0 0.0
    %684 = vmatprep.subr.mxu0 0.0
    %685 = vmatpush1.xpose.msra.mxu0 0.0
    %686 = vmatprep.subr.mxu0 0.0
    %687 = vmatpush1.xpose.msra.mxu0 0.0
    %688 = vmatprep.subr.mxu0 0.0
    %689 = vmatpush1.xpose.msra.mxu0 0.0
    %690 = vmatprep.subr.mxu0 0.0
    %691 = vmatpush1.xpose.msra.mxu0 0.0
    %692 = vmatprep.subr.mxu0 0.0
    %693 = vmatpush1.xpose.msra.mxu0 0.0
    %694 = vmatprep.subr.mxu0 0.0
    %695 = vmatpush1.xpose.msra.mxu0 0.0
    %696 = vmatprep.subr.mxu0 0.0
    %697 = vmatpush1.xpose.msra.mxu0 0.0
    %698 = vmatprep.subr.mxu0 0.0
    %699 = vmatpush1.xpose.msra.mxu0 0.0
    %700 = vmatprep.subr.mxu0 0.0
    %701 = vmatpush1.xpose.msra.mxu0 0.0
    %702 = vmatprep.subr.mxu0 0.0
    %703 = vmatpush1.xpose.msra.mxu0 0.0
    %704 = vmatprep.subr.mxu0 0.0
    %705 = vmatpush1.xpose.msra.mxu0 0.0
    %706 = vmatprep.subr.mxu0 0.0
    %707 = vmatpush1.xpose.msra.mxu0 0.0
    %708 = vmatprep.subr.mxu0 0.0
    %709 = vmatpush1.xpose.msra.mxu0 0.0
    %710 = vmatprep.subr.mxu0 0.0
    %711 = vmatpush1.xpose.msra.mxu0 0.0
    %712 = vmatprep.subr.mxu0 0.0
    %713 = vmatpush1.xpose.msra.mxu0 0.0
    %714 = vmatprep.subr.mxu0 0.0
    %715 = vmatpush1.xpose.msra.mxu0 0.0
    %716 = vmatprep.subr.mxu0 0.0
    %717 = vmatpush1.xpose.msra.mxu0 0.0
    %718 = vmatprep.subr.mxu0 0.0
    %719 = vmatpush1.xpose.msra.mxu0 0.0
    %720 = vmatprep.subr.mxu0 0.0
    %721 = vmatpush1.xpose.msra.mxu0 0.0
    %722 = vmatprep.subr.mxu0 0.0
    %723 = vmatpush1.xpose.msra.mxu0 0.0
    %724 = vmatprep.subr.mxu0 0.0
    %725 = vmatpush1.xpose.msra.mxu0 0.0
    %726 = vmatprep.subr.mxu0 0.0
    %727 = vmatpush1.xpose.msra.mxu0 0.0
    %728 = vmatprep.subr.mxu0 0.0
    %729 = vmatpush1.xpose.msra.mxu0 0.0
    %730 = vmatprep.subr.mxu0 0.0
    %731 = vmatpush1.xpose.msra.mxu0 0.0
    %732 = vmatprep.subr.mxu0 0.0
    %733 = vmatpush1.xpose.msra.mxu0 0.0
    %734 = vmatprep.subr.mxu0 0.0
    %735 = vmatpush1.xpose.msra.mxu0 0.0
    %736 = vmatprep.mubr.f32.mxu0 0.0
    %737 = vmatmul.mubr.f32.gmra.mrb[0].mxu0 %v668
    %v738 = vpop.f32.mrb[0].mxu0
    %v739 = vadd.f32 0.0, %v738
    %v740 = vpop.f32.mrb[0].mxu0
    %741 = vdwg.mxu0
    %v742 = vsel %vm337, %v739, -inf
    %743 = vmax.xlane.f32.xlu0 %v742
    %v744 = vpop.xlane.xlu0 %743
    %v745 = vsub.f32 %v739, %v744
    %v746 = vmul.f32 %v745, 1.442695
    %v747 = vpow.pop %v746
    %v748 = vsel %vm337, %v747, 0.0
    %749 = vadd.xlane.f32.xlu0 %v748
    %v750 = vpop.xlane.xlu0 %749
    %v751 = vrcp.pop %v750
    %v752 = vmul.f32 %v747, %v751
    %753 = vrot.lane.b32.xlu0 %v329, 112
    %v754 = vpop.permute.xlu0 %753
    %v757 = vsel %vm337, %v752, 0
    %759 = vmatprep.subr.mxu0 0.0
    %760 = vmatpush1.msra.mxu0 %v754
    %761 = vmatprep.subr.mxu0 0.0
    %762 = vmatpush1.msra.mxu0 0.0
    %763 = vmatprep.subr.mxu0 0.0
    %764 = vmatpush1.msra.mxu0 0.0
    %765 = vmatprep.subr.mxu0 0.0
    %766 = vmatpush1.msra.mxu0 0.0
    %767 = vmatprep.subr.mxu0 0.0
    %768 = vmatpush1.msra.mxu0 0.0
    %769 = vmatprep.subr.mxu0 0.0
    %770 = vmatpush1.msra.mxu0 0.0
    %771 = vmatprep.subr.mxu0 0.0
    %772 = vmatpush1.msra.mxu0 0.0
    %773 = vmatprep.subr.mxu0 0.0
    %774 = vmatpush1.msra.mxu0 0.0
    %775 = vmatprep.subr.mxu0 0.0
    %776 = vmatpush1.msra.mxu0 0.0
    %777 = vmatprep.subr.mxu0 0.0
    %778 = vmatpush1.msra.mxu0 0.0
    %779 = vmatprep.subr.mxu0 0.0
    %780 = vmatpush1.msra.mxu0 0.0
    %781 = vmatprep.subr.mxu0 0.0
    %782 = vmatpush1.msra.mxu0 0.0
    %783 = vmatprep.subr.mxu0 0.0
    %784 = vmatpush1.msra.mxu0 0.0
    %785 = vmatprep.subr.mxu0 0.0
    %786 = vmatpush1.msra.mxu0 0.0
    %787 = vmatprep.subr.mxu0 0.0
    %788 = vmatpush1.msra.mxu0 0.0
    %789 = vmatprep.subr.mxu0 0.0
    %790 = vmatpush1.msra.mxu0 0.0
    %791 = vmatprep.subr.mxu0 0.0
    %792 = vmatpush1.msra.mxu0 0.0
    %793 = vmatprep.subr.mxu0 0.0
    %794 = vmatpush1.msra.mxu0 0.0
    %795 = vmatprep.subr.mxu0 0.0
    %796 = vmatpush1.msra.mxu0 0.0
    %797 = vmatprep.subr.mxu0 0.0
    %798 = vmatpush1.msra.mxu0 0.0
    %799 = vmatprep.subr.mxu0 0.0
    %800 = vmatpush1.msra.mxu0 0.0
    %801 = vmatprep.subr.mxu0 0.0
    %802 = vmatpush1.msra.mxu0 0.0
    %803 = vmatprep.subr.mxu0 0.0
    %804 = vmatpush1.msra.mxu0 0.0
    %805 = vmatprep.subr.mxu0 0.0
    %806 = vmatpush1.msra.mxu0 0.0
    %807 = vmatprep.subr.mxu0 0.0
    %808 = vmatpush1.msra.mxu0 0.0
    %809 = vmatprep.subr.mxu0 0.0
    %810 = vmatpush1.msra.mxu0 0.0
    %811 = vmatprep.subr.mxu0 0.0
    %812 = vmatpush1.msra.mxu0 0.0
    %813 = vmatprep.subr.mxu0 0.0
    %814 = vmatpush1.msra.mxu0 0.0
    %815 = vmatprep.subr.mxu0 0.0
    %816 = vmatpush1.msra.mxu0 0.0
    %817 = vmatprep.subr.mxu0 0.0
    %818 = vmatpush1.msra.mxu0 0.0
    %819 = vmatprep.subr.mxu0 0.0
    %820 = vmatpush1.msra.mxu0 0.0
    %821 = vmatprep.subr.mxu0 0.0
    %822 = vmatpush1.msra.mxu0 0.0
    %823 = vmatprep.mubr.f32.mxu0 0.0
    %824 = vmatmul.mubr.f32.gmra.mrb[0].mxu0 %v757
    %v825 = vpop.f32.mrb[0].mxu0
    %v826 = vadd.f32 0.0, %v825
    %v827 = vpop.f32.mrb[0].mxu0
    %828 = vdwg.mxu0
    %829 = vrot.lane.b32.xlu0 %v177, 104
    %v830 = vpop.permute.xlu0 %829
    %831 = vrot.lane.b32.xlu0 %v250, 104
    %v832 = vpop.permute.xlu0 %831
    %v833 = vsel %vm337, %v830, 0
    %v835 = vsel %vm337, %v832, 0
    %837 = vmatprep.subr.mxu0 0.0
    %838 = vmatpush1.xpose.msra.mxu0 %v835
    %839 = vmatprep.subr.mxu0 0.0
    %840 = vmatpush1.xpose.msra.mxu0 0.0
    %841 = vmatprep.subr.mxu0 0.0
    %842 = vmatpush1.xpose.msra.mxu0 0.0
    %843 = vmatprep.subr.mxu0 0.0
    %844 = vmatpush1.xpose.msra.mxu0 0.0
    %845 = vmatprep.subr.mxu0 0.0
    %846 = vmatpush1.xpose.msra.mxu0 0.0
    %847 = vmatprep.subr.mxu0 0.0
    %848 = vmatpush1.xpose.msra.mxu0 0.0
    %849 = vmatprep.subr.mxu0 0.0
    %850 = vmatpush1.xpose.msra.mxu0 0.0
    %851 = vmatprep.subr.mxu0 0.0
    %852 = vmatpush1.xpose.msra.mxu0 0.0
    %853 = vmatprep.subr.mxu0 0.0
    %854 = vmatpush1.xpose.msra.mxu0 0.0
    %855 = vmatprep.subr.mxu0 0.0
    %856 = vmatpush1.xpose.msra.mxu0 0.0
    %857 = vmatprep.subr.mxu0 0.0
    %858 = vmatpush1.xpose.msra.mxu0 0.0
    %859 = vmatprep.subr.mxu0 0.0
    %860 = vmatpush1.xpose.msra.mxu0 0.0
    %861 = vmatprep.subr.mxu0 0.0
    %862 = vmatpush1.xpose.msra.mxu0 0.0
    %863 = vmatprep.subr.mxu0 0.0
    %864 = vmatpush1.xpose.msra.mxu0 0.0
    %865 = vmatprep.subr.mxu0 0.0
    %866 = vmatpush1.xpose.msra.mxu0 0.0
    %867 = vmatprep.subr.mxu0 0.0
    %868 = vmatpush1.xpose.msra.mxu0 0.0
    %869 = vmatprep.subr.mxu0 0.0
    %870 = vmatpush1.xpose.msra.mxu0 0.0
    %871 = vmatprep.subr.mxu0 0.0
    %872 = vmatpush1.xpose.msra.mxu0 0.0
    %873 = vmatprep.subr.mxu0 0.0
    %874 = vmatpush1.xpose.msra.mxu0 0.0
    %875 = vmatprep.subr.mxu0 0.0
    %876 = vmatpush1.xpose.msra.mxu0 0.0
    %877 = vmatprep.subr.mxu0 0.0
    %878 = vmatpush1.xpose.msra.mxu0 0.0
    %879 = vmatprep.subr.mxu0 0.0
    %880 = vmatpush1.xpose.msra.mxu0 0.0
    %881 = vmatprep.subr.mxu0 0.0
    %882 = vmatpush1.xpose.msra.mxu0 0.0
    %883 = vmatprep.subr.mxu0 0.0
    %884 = vmatpush1.xpose.msra.mxu0 0.0
    %885 = vmatprep.subr.mxu0 0.0
    %886 = vmatpush1.xpose.msra.mxu0 0.0
    %887 = vmatprep.subr.mxu0 0.0
    %888 = vmatpush1.xpose.msra.mxu0 0.0
    %889 = vmatprep.subr.mxu0 0.0
    %890 = vmatpush1.xpose.msra.mxu0 0.0
    %891 = vmatprep.subr.mxu0 0.0
    %892 = vmatpush1.xpose.msra.mxu0 0.0
    %893 = vmatprep.subr.mxu0 0.0
    %894 = vmatpush1.xpose.msra.mxu0 0.0
    %895 = vmatprep.subr.mxu0 0.0
    %896 = vmatpush1.xpose.msra.mxu0 0.0
    %897 = vmatprep.subr.mxu0 0.0
    %898 = vmatpush1.xpose.msra.mxu0 0.0
    %899 = vmatprep.subr.mxu0 0.0
    %900 = vmatpush1.xpose.msra.mxu0 0.0
    %901 = vmatprep.mubr.f32.mxu0 0.0
    %902 = vmatmul.mubr.f32.gmra.mrb[0].mxu0 %v833
    %v903 = vpop.f32.mrb[0].mxu0
    %v904 = vadd.f32 0.0, %v903
    %v905 = vpop.f32.mrb[0].mxu0
    %906 = vdwg.mxu0
    %v907 = vsel %vm337, %v904, -inf
    %908 = vmax.xlane.f32.xlu0 %v907
    %v909 = vpop.xlane.xlu0 %908
    %v910 = vsub.f32 %v904, %v909
    %v911 = vmul.f32 %v910, 1.442695
    %v912 = vpow.pop %v911
    %v913 = vsel %vm337, %v912, 0.0
    %914 = vadd.xlane.f32.xlu0 %v913
    %v915 = vpop.xlane.xlu0 %914
    %v916 = vrcp.pop %v915
    %v917 = vmul.f32 %v912, %v916
    %918 = vrot.lane.b32.xlu0 %v329, 104
    %v919 = vpop.permute.xlu0 %918
    %v922 = vsel %vm337, %v917, 0
    %924 = vmatprep.subr.mxu0 0.0
    %925 = vmatpush1.msra.mxu0 %v919
    %926 = vmatprep.subr.mxu0 0.0
    %927 = vmatpush1.msra.mxu0 0.0
    %928 = vmatprep.subr.mxu0 0.0
    %929 = vmatpush1.msra.mxu0 0.0
    %930 = vmatprep.subr.mxu0 0.0
    %931 = vmatpush1.msra.mxu0 0.0
    %932 = vmatprep.subr.mxu0 0.0
    %933 = vmatpush1.msra.mxu0 0.0
    %934 = vmatprep.subr.mxu0 0.0
    %935 = vmatpush1.msra.mxu0 0.0
    %936 = vmatprep.subr.mxu0 0.0
    %937 = vmatpush1.msra.mxu0 0.0
    %938 = vmatprep.subr.mxu0 0.0
    %939 = vmatpush1.msra.mxu0 0.0
    %940 = vmatprep.subr.mxu0 0.0
    %941 = vmatpush1.msra.mxu0 0.0
    %942 = vmatprep.subr.mxu0 0.0
    %943 = vmatpush1.msra.mxu0 0.0
    %944 = vmatprep.subr.mxu0 0.0
    %945 = vmatpush1.msra.mxu0 0.0
    %946 = vmatprep.subr.mxu0 0.0
    %947 = vmatpush1.msra.mxu0 0.0
    %948 = vmatprep.subr.mxu0 0.0
    %949 = vmatpush1.msra.mxu0 0.0
    %950 = vmatprep.subr.mxu0 0.0
    %951 = vmatpush1.msra.mxu0 0.0
    %952 = vmatprep.subr.mxu0 0.0
    %953 = vmatpush1.msra.mxu0 0.0
    %954 = vmatprep.subr.mxu0 0.0
    %955 = vmatpush1.msra.mxu0 0.0
    %956 = vmatprep.subr.mxu0 0.0
    %957 = vmatpush1.msra.mxu0 0.0
    %958 = vmatprep.subr.mxu0 0.0
    %959 = vmatpush1.msra.mxu0 0.0
    %960 = vmatprep.subr.mxu0 0.0
    %961 = vmatpush1.msra.mxu0 0.0
    %962 = vmatprep.subr.mxu0 0.0
    %963 = vmatpush1.msra.mxu0 0.0
    %964 = vmatprep.subr.mxu0 0.0
    %965 = vmatpush1.msra.mxu0 0.0
    %966 = vmatprep.subr.mxu0 0.0
    %967 = vmatpush1.msra.mxu0 0.0
    %968 = vmatprep.subr.mxu0 0.0
    %969 = vmatpush1.msra.mxu0 0.0
    %970 = vmatprep.subr.mxu0 0.0
    %971 = vmatpush1.msra.mxu0 0.0
    %972 = vmatprep.subr.mxu0 0.0
    %973 = vmatpush1.msra.mxu0 0.0
    %974 = vmatprep.subr.mxu0 0.0
    %975 = vmatpush1.msra.mxu0 0.0
    %976 = vmatprep.subr.mxu0 0.0
    %977 = vmatpush1.msra.mxu0 0.0
    %978 = vmatprep.subr.mxu0 0.0
    %979 = vmatpush1.msra.mxu0 0.0
    %980 = vmatprep.subr.mxu0 0.0
    %981 = vmatpush1.msra.mxu0 0.0
    %982 = vmatprep.subr.mxu0 0.0
    %983 = vmatpush1.msra.mxu0 0.0
    %984 = vmatprep.subr.mxu0 0.0
    %985 = vmatpush1.msra.mxu0 0.0
    %986 = vmatprep.subr.mxu0 0.0
    %987 = vmatpush1.msra.mxu0 0.0
    %988 = vmatprep.mubr.f32.mxu0 0.0
    %989 = vmatmul.mubr.f32.gmra.mrb[0].mxu0 %v922
    %v990 = vpop.f32.mrb[0].mxu0
    %v991 = vadd.f32 0.0, %v990
    %v992 = vpop.f32.mrb[0].mxu0
    %993 = vdwg.mxu0
    %v995 = vsel %vm337, %v178, 0
    %v998 = vsel %vm337, %v255, 0
    %1000 = vmatprep.subr.mxu0 0.0
    %1001 = vmatpush1.xpose.msra.mxu0 %v998
    %1002 = vmatprep.subr.mxu0 0.0
    %1003 = vmatpush1.xpose.msra.mxu0 0.0
    %1004 = vmatprep.subr.mxu0 0.0
    %1005 = vmatpush1.xpose.msra.mxu0 0.0
    %1006 = vmatprep.subr.mxu0 0.0
    %1007 = vmatpush1.xpose.msra.mxu0 0.0
    %1008 = vmatprep.subr.mxu0 0.0
    %1009 = vmatpush1.xpose.msra.mxu0 0.0
    %1010 = vmatprep.subr.mxu0 0.0
    %1011 = vmatpush1.xpose.msra.mxu0 0.0
    %1012 = vmatprep.subr.mxu0 0.0
    %1013 = vmatpush1.xpose.msra.mxu0 0.0
    %1014 = vmatprep.subr.mxu0 0.0
    %1015 = vmatpush1.xpose.msra.mxu0 0.0
    %1016 = vmatprep.subr.mxu0 0.0
    %1017 = vmatpush1.xpose.msra.mxu0 0.0
    %1018 = vmatprep.subr.mxu0 0.0
    %1019 = vmatpush1.xpose.msra.mxu0 0.0
    %1020 = vmatprep.subr.mxu0 0.0
    %1021 = vmatpush1.xpose.msra.mxu0 0.0
    %1022 = vmatprep.subr.mxu0 0.0
    %1023 = vmatpush1.xpose.msra.mxu0 0.0
    %1024 = vmatprep.subr.mxu0 0.0
    %1025 = vmatpush1.xpose.msra.mxu0 0.0
    %1026 = vmatprep.subr.mxu0 0.0
    %1027 = vmatpush1.xpose.msra.mxu0 0.0
    %1028 = vmatprep.subr.mxu0 0.0
    %1029 = vmatpush1.xpose.msra.mxu0 0.0
    %1030 = vmatprep.subr.mxu0 0.0
    %1031 = vmatpush1.xpose.msra.mxu0 0.0
    %1032 = vmatprep.subr.mxu0 0.0
    %1033 = vmatpush1.xpose.msra.mxu0 0.0
    %1034 = vmatprep.subr.mxu0 0.0
    %1035 = vmatpush1.xpose.msra.mxu0 0.0
    %1036 = vmatprep.subr.mxu0 0.0
    %1037 = vmatpush1.xpose.msra.mxu0 0.0
    %1038 = vmatprep.subr.mxu0 0.0
    %1039 = vmatpush1.xpose.msra.mxu0 0.0
    %1040 = vmatprep.subr.mxu0 0.0
    %1041 = vmatpush1.xpose.msra.mxu0 0.0
    %1042 = vmatprep.subr.mxu0 0.0
    %1043 = vmatpush1.xpose.msra.mxu0 0.0
    %1044 = vmatprep.subr.mxu0 0.0
    %1045 = vmatpush1.xpose.msra.mxu0 0.0
    %1046 = vmatprep.subr.mxu0 0.0
    %1047 = vmatpush1.xpose.msra.mxu0 0.0
    %1048 = vmatprep.subr.mxu0 0.0
    %1049 = vmatpush1.xpose.msra.mxu0 0.0
    %1050 = vmatprep.subr.mxu0 0.0
    %1051 = vmatpush1.xpose.msra.mxu0 0.0
    %1052 = vmatprep.subr.mxu0 0.0
    %1053 = vmatpush1.xpose.msra.mxu0 0.0
    %1054 = vmatprep.subr.mxu0 0.0
    %1055 = vmatpush1.xpose.msra.mxu0 0.0
    %1056 = vmatprep.subr.mxu0 0.0
    %1057 = vmatpush1.xpose.msra.mxu0 0.0
    %1058 = vmatprep.subr.mxu0 0.0
    %1059 = vmatpush1.xpose.msra.mxu0 0.0
    %1060 = vmatprep.subr.mxu0 0.0
    %1061 = vmatpush1.xpose.msra.mxu0 0.0
    %1062 = vmatprep.subr.mxu0 0.0
    %1063 = vmatpush1.xpose.msra.mxu0 0.0
    %1064 = vmatprep.mubr.f32.mxu0 0.0
    %1065 = vmatmul.mubr.f32.gmra.mrb[0].mxu0 %v995
    %v1066 = vpop.f32.mrb[0].mxu0
    %v1067 = vadd.f32 0.0, %v1066
    %v1068 = vpop.f32.mrb[0].mxu0
    %1069 = vdwg.mxu0
    %v1070 = vsel %vm337, %v1067, -inf
    %1071 = vmax.xlane.f32.xlu0 %v1070
    %v1072 = vpop.xlane.xlu0 %1071
    %v1073 = vsub.f32 %v1067, %v1072
    %v1074 = vmul.f32 %v1073, 1.442695
    %v1075 = vpow.pop %v1074
    %v1076 = vsel %vm337, %v1075, 0.0
    %1077 = vadd.xlane.f32.xlu0 %v1076
    %v1078 = vpop.xlane.xlu0 %1077
    %v1079 = vrcp.pop %v1078
    %v1080 = vmul.f32 %v1075, %v1079
    %v1082 = vsel %vm337, %v1080, 0
    %1084 = vmatprep.subr.mxu0 0.0
    %1085 = vmatpush1.msra.mxu0 %v334
    %1086 = vmatprep.subr.mxu0 0.0
    %1087 = vmatpush1.msra.mxu0 0.0
    %1088 = vmatprep.subr.mxu0 0.0
    %1089 = vmatpush1.msra.mxu0 0.0
    %1090 = vmatprep.subr.mxu0 0.0
    %1091 = vmatpush1.msra.mxu0 0.0
    %1092 = vmatprep.subr.mxu0 0.0
    %1093 = vmatpush1.msra.mxu0 0.0
    %1094 = vmatprep.subr.mxu0 0.0
    %1095 = vmatpush1.msra.mxu0 0.0
    %1096 = vmatprep.subr.mxu0 0.0
    %1097 = vmatpush1.msra.mxu0 0.0
    %1098 = vmatprep.subr.mxu0 0.0
    %1099 = vmatpush1.msra.mxu0 0.0
    %1100 = vmatprep.subr.mxu0 0.0
    %1101 = vmatpush1.msra.mxu0 0.0
    %1102 = vmatprep.subr.mxu0 0.0
    %1103 = vmatpush1.msra.mxu0 0.0
    %1104 = vmatprep.subr.mxu0 0.0
    %1105 = vmatpush1.msra.mxu0 0.0
    %1106 = vmatprep.subr.mxu0 0.0
    %1107 = vmatpush1.msra.mxu0 0.0
    %1108 = vmatprep.subr.mxu0 0.0
    %1109 = vmatpush1.msra.mxu0 0.0
    %1110 = vmatprep.subr.mxu0 0.0
    %1111 = vmatpush1.msra.mxu0 0.0
    %1112 = vmatprep.subr.mxu0 0.0
    %1113 = vmatpush1.msra.mxu0 0.0
    %1114 = vmatprep.subr.mxu0 0.0
    %1115 = vmatpush1.msra.mxu0 0.0
    %1116 = vmatprep.subr.mxu0 0.0
    %1117 = vmatpush1.msra.mxu0 0.0
    %1118 = vmatprep.subr.mxu0 0.0
    %1119 = vmatpush1.msra.mxu0 0.0
    %1120 = vmatprep.subr.mxu0 0.0
    %1121 = vmatpush1.msra.mxu0 0.0
    %1122 = vmatprep.subr.mxu0 0.0
    %1123 = vmatpush1.msra.mxu0 0.0
    %1124 = vmatprep.subr.mxu0 0.0
    %1125 = vmatpush1.msra.mxu0 0.0
    %1126 = vmatprep.subr.mxu0 0.0
    %1127 = vmatpush1.msra.mxu0 0.0
    %1128 = vmatprep.subr.mxu0 0.0
    %1129 = vmatpush1.msra.mxu0 0.0
    %1130 = vmatprep.subr.mxu0 0.0
    %1131 = vmatpush1.msra.mxu0 0.0
    %1132 = vmatprep.subr.mxu0 0.0
    %1133 = vmatpush1.msra.mxu0 0.0
    %1134 = vmatprep.subr.mxu0 0.0
    %1135 = vmatpush1.msra.mxu0 0.0
    %1136 = vmatprep.subr.mxu0 0.0
    %1137 = vmatpush1.msra.mxu0 0.0
    %1138 = vmatprep.subr.mxu0 0.0
    %1139 = vmatpush1.msra.mxu0 0.0
    %1140 = vmatprep.subr.mxu0 0.0
    %1141 = vmatpush1.msra.mxu0 0.0
    %1142 = vmatprep.subr.mxu0 0.0
    %1143 = vmatpush1.msra.mxu0 0.0
    %1144 = vmatprep.subr.mxu0 0.0
    %1145 = vmatpush1.msra.mxu0 0.0
    %1146 = vmatprep.subr.mxu0 0.0
    %1147 = vmatpush1.msra.mxu0 0.0
    %1148 = vmatprep.mubr.f32.mxu0 0.0
    %1149 = vmatmul.mubr.f32.gmra.mrb[0].mxu0 %v1082
    %v1150 = vpop.f32.mrb[0].mxu0
    %v1151 = vadd.f32 0.0, %v1150
    %v1152 = vpop.f32.mrb[0].mxu0
    %1153 = vdwg.mxu0
    %1154 = vrot.lane.b32.xlu0 %v178, 120
    %v1155 = vpop.permute.xlu0 %1154
    %1156 = vrot.lane.b32.xlu0 %v255, 120
    %v1157 = vpop.permute.xlu0 %1156
    %v1158 = vsel %vm337, %v1155, 0
    %v1160 = vsel %vm337, %v1157, 0
    %1162 = vmatprep.subr.mxu0 0.0
    %1163 = vmatpush1.xpose.msra.mxu0 %v1160
    %1164 = vmatprep.subr.mxu0 0.0
    %1165 = vmatpush1.xpose.msra.mxu0 0.0
    %1166 = vmatprep.subr.mxu0 0.0
    %1167 = vmatpush1.xpose.msra.mxu0 0.0
    %1168 = vmatprep.subr.mxu0 0.0
    %1169 = vmatpush1.xpose.msra.mxu0 0.0
    %1170 = vmatprep.subr.mxu0 0.0
    %1171 = vmatpush1.xpose.msra.mxu0 0.0
    %1172 = vmatprep.subr.mxu0 0.0
    %1173 = vmatpush1.xpose.msra.mxu0 0.0
    %1174 = vmatprep.subr.mxu0 0.0
    %1175 = vmatpush1.xpose.msra.mxu0 0.0
    %1176 = vmatprep.subr.mxu0 0.0
    %1177 = vmatpush1.xpose.msra.mxu0 0.0
    %1178 = vmatprep.subr.mxu0 0.0
    %1179 = vmatpush1.xpose.msra.mxu0 0.0
    %1180 = vmatprep.subr.mxu0 0.0
    %1181 = vmatpush1.xpose.msra.mxu0 0.0
    %1182 = vmatprep.subr.mxu0 0.0
    %1183 = vmatpush1.xpose.msra.mxu0 0.0
    %1184 = vmatprep.subr.mxu0 0.0
    %1185 = vmatpush1.xpose.msra.mxu0 0.0
    %1186 = vmatprep.subr.mxu0 0.0
    %1187 = vmatpush1.xpose.msra.mxu0 0.0
    %1188 = vmatprep.subr.mxu0 0.0
    %1189 = vmatpush1.xpose.msra.mxu0 0.0
    %1190 = vmatprep.subr.mxu0 0.0
    %1191 = vmatpush1.xpose.msra.mxu0 0.0
    %1192 = vmatprep.subr.mxu0 0.0
    %1193 = vmatpush1.xpose.msra.mxu0 0.0
    %1194 = vmatprep.subr.mxu0 0.0
    %1195 = vmatpush1.xpose.msra.mxu0 0.0
    %1196 = vmatprep.subr.mxu0 0.0
    %1197 = vmatpush1.xpose.msra.mxu0 0.0
    %1198 = vmatprep.subr.mxu0 0.0
    %1199 = vmatpush1.xpose.msra.mxu0 0.0
    %1200 = vmatprep.subr.mxu0 0.0
    %1201 = vmatpush1.xpose.msra.mxu0 0.0
    %1202 = vmatprep.subr.mxu0 0.0
    %1203 = vmatpush1.xpose.msra.mxu0 0.0
    %1204 = vmatprep.subr.mxu0 0.0
    %1205 = vmatpush1.xpose.msra.mxu0 0.0
    %1206 = vmatprep.subr.mxu0 0.0
    %1207 = vmatpush1.xpose.msra.mxu0 0.0
    %1208 = vmatprep.subr.mxu0 0.0
    %1209 = vmatpush1.xpose.msra.mxu0 0.0
    %1210 = vmatprep.subr.mxu0 0.0
    %1211 = vmatpush1.xpose.msra.mxu0 0.0
    %1212 = vmatprep.subr.mxu0 0.0
    %1213 = vmatpush1.xpose.msra.mxu0 0.0
    %1214 = vmatprep.subr.mxu0 0.0
    %1215 = vmatpush1.xpose.msra.mxu0 0.0
    %1216 = vmatprep.subr.mxu0 0.0
    %1217 = vmatpush1.xpose.msra.mxu0 0.0
    %1218 = vmatprep.subr.mxu0 0.0
    %1219 = vmatpush1.xpose.msra.mxu0 0.0
    %1220 = vmatprep.subr.mxu0 0.0
    %1221 = vmatpush1.xpose.msra.mxu0 0.0
    %1222 = vmatprep.subr.mxu0 0.0
    %1223 = vmatpush1.xpose.msra.mxu0 0.0
    %1224 = vmatprep.subr.mxu0 0.0
    %1225 = vmatpush1.xpose.msra.mxu0 0.0
    %1226 = vmatprep.mubr.f32.mxu0 0.0
    %1227 = vmatmul.mubr.f32.gmra.mrb[0].mxu0 %v1158
    %v1228 = vpop.f32.mrb[0].mxu0
    %v1229 = vadd.f32 0.0, %v1228
    %v1230 = vpop.f32.mrb[0].mxu0
    %1231 = vdwg.mxu0
    %v1232 = vsel %vm337, %v1229, -inf
    %1233 = vmax.xlane.f32.xlu0 %v1232
    %v1234 = vpop.xlane.xlu0 %1233
    %v1235 = vsub.f32 %v1229, %v1234
    %v1236 = vmul.f32 %v1235, 1.442695
    %v1237 = vpow.pop %v1236
    %v1238 = vsel %vm337, %v1237, 0.0
    %1239 = vadd.xlane.f32.xlu0 %v1238
    %v1240 = vpop.xlane.xlu0 %1239
    %v1241 = vrcp.pop %v1240
    %v1242 = vmul.f32 %v1237, %v1241
    %1244 = vrot.lane.b32.xlu0 %v334, 120
    %v1245 = vpop.permute.xlu0 %1244
    %v1248 = vsel %vm337, %v1242, 0
    %1250 = vmatprep.subr.mxu0 0.0
    %1251 = vmatpush1.msra.mxu0 %v1245
    %1252 = vmatprep.subr.mxu0 0.0
    %1253 = vmatpush1.msra.mxu0 0.0
    %1254 = vmatprep.subr.mxu0 0.0
    %1255 = vmatpush1.msra.mxu0 0.0
    %1256 = vmatprep.subr.mxu0 0.0
    %1257 = vmatpush1.msra.mxu0 0.0
    %1258 = vmatprep.subr.mxu0 0.0
    %1259 = vmatpush1.msra.mxu0 0.0
    %1260 = vmatprep.subr.mxu0 0.0
    %1261 = vmatpush1.msra.mxu0 0.0
    %1262 = vmatprep.subr.mxu0 0.0
    %1263 = vmatpush1.msra.mxu0 0.0
    %1264 = vmatprep.subr.mxu0 0.0
    %1265 = vmatpush1.msra.mxu0 0.0
    %1266 = vmatprep.subr.mxu0 0.0
    %1267 = vmatpush1.msra.mxu0 0.0
    %1268 = vmatprep.subr.mxu0 0.0
    %1269 = vmatpush1.msra.mxu0 0.0
    %1270 = vmatprep.subr.mxu0 0.0
    %1271 = vmatpush1.msra.mxu0 0.0
    %1272 = vmatprep.subr.mxu0 0.0
    %1273 = vmatpush1.msra.mxu0 0.0
    %1274 = vmatprep.subr.mxu0 0.0
    %1275 = vmatpush1.msra.mxu0 0.0
    %1276 = vmatprep.subr.mxu0 0.0
    %1277 = vmatpush1.msra.mxu0 0.0
    %1278 = vmatprep.subr.mxu0 0.0
    %1279 = vmatpush1.msra.mxu0 0.0
    %1280 = vmatprep.subr.mxu0 0.0
    %1281 = vmatpush1.msra.mxu0 0.0
    %1282 = vmatprep.subr.mxu0 0.0
    %1283 = vmatpush1.msra.mxu0 0.0
    %1284 = vmatprep.subr.mxu0 0.0
    %1285 = vmatpush1.msra.mxu0 0.0
    %1286 = vmatprep.subr.mxu0 0.0
    %1287 = vmatpush1.msra.mxu0 0.0
    %1288 = vmatprep.subr.mxu0 0.0
    %1289 = vmatpush1.msra.mxu0 0.0
    %1290 = vmatprep.subr.mxu0 0.0
    %1291 = vmatpush1.msra.mxu0 0.0
    %1292 = vmatprep.subr.mxu0 0.0
    %1293 = vmatpush1.msra.mxu0 0.0
    %1294 = vmatprep.subr.mxu0 0.0
    %1295 = vmatpush1.msra.mxu0 0.0
    %1296 = vmatprep.subr.mxu0 0.0
    %1297 = vmatpush1.msra.mxu0 0.0
    %1298 = vmatprep.subr.mxu0 0.0
    %1299 = vmatpush1.msra.mxu0 0.0
    %1300 = vmatprep.subr.mxu0 0.0
    %1301 = vmatpush1.msra.mxu0 0.0
    %1302 = vmatprep.subr.mxu0 0.0
    %1303 = vmatpush1.msra.mxu0 0.0
    %1304 = vmatprep.subr.mxu0 0.0
    %1305 = vmatpush1.msra.mxu0 0.0
    %1306 = vmatprep.subr.mxu0 0.0
    %1307 = vmatpush1.msra.mxu0 0.0
    %1308 = vmatprep.subr.mxu0 0.0
    %1309 = vmatpush1.msra.mxu0 0.0
    %1310 = vmatprep.subr.mxu0 0.0
    %1311 = vmatpush1.msra.mxu0 0.0
    %1312 = vmatprep.subr.mxu0 0.0
    %1313 = vmatpush1.msra.mxu0 0.0
    %1314 = vmatprep.mubr.f32.mxu0 0.0
    %1315 = vmatmul.mubr.f32.gmra.mrb[0].mxu0 %v1248
    %v1316 = vpop.f32.mrb[0].mxu0
    %v1317 = vadd.f32 0.0, %v1316
    %v1318 = vpop.f32.mrb[0].mxu0
    %1319 = vdwg.mxu0
    %1320 = vrot.lane.b32.xlu0 %v178, 112
    %v1321 = vpop.permute.xlu0 %1320
    %1322 = vrot.lane.b32.xlu0 %v255, 112
    %v1323 = vpop.permute.xlu0 %1322
    %v1324 = vsel %vm337, %v1321, 0
    %v1326 = vsel %vm337, %v1323, 0
    %1328 = vmatprep.subr.mxu0 0.0
    %1329 = vmatpush1.xpose.msra.mxu0 %v1326
    %1330 = vmatprep.subr.mxu0 0.0
    %1331 = vmatpush1.xpose.msra.mxu0 0.0
    %1332 = vmatprep.subr.mxu0 0.0
    %1333 = vmatpush1.xpose.msra.mxu0 0.0
    %1334 = vmatprep.subr.mxu0 0.0
    %1335 = vmatpush1.xpose.msra.mxu0 0.0
    %1336 = vmatprep.subr.mxu0 0.0
    %1337 = vmatpush1.xpose.msra.mxu0 0.0
    %1338 = vmatprep.subr.mxu0 0.0
    %1339 = vmatpush1.xpose.msra.mxu0 0.0
    %1340 = vmatprep.subr.mxu0 0.0
    %1341 = vmatpush1.xpose.msra.mxu0 0.0
    %1342 = vmatprep.subr.mxu0 0.0
    %1343 = vmatpush1.xpose.msra.mxu0 0.0
    %1344 = vmatprep.subr.mxu0 0.0
    %1345 = vmatpush1.xpose.msra.mxu0 0.0
    %1346 = vmatprep.subr.mxu0 0.0
    %1347 = vmatpush1.xpose.msra.mxu0 0.0
    %1348 = vmatprep.subr.mxu0 0.0
    %1349 = vmatpush1.xpose.msra.mxu0 0.0
    %1350 = vmatprep.subr.mxu0 0.0
    %1351 = vmatpush1.xpose.msra.mxu0 0.0
    %1352 = vmatprep.subr.mxu0 0.0
    %1353 = vmatpush1.xpose.msra.mxu0 0.0
    %1354 = vmatprep.subr.mxu0 0.0
    %1355 = vmatpush1.xpose.msra.mxu0 0.0
    %1356 = vmatprep.subr.mxu0 0.0
    %1357 = vmatpush1.xpose.msra.mxu0 0.0
    %1358 = vmatprep.subr.mxu0 0.0
    %1359 = vmatpush1.xpose.msra.mxu0 0.0
    %1360 = vmatprep.subr.mxu0 0.0
    %1361 = vmatpush1.xpose.msra.mxu0 0.0
    %1362 = vmatprep.subr.mxu0 0.0
    %1363 = vmatpush1.xpose.msra.mxu0 0.0
    %1364 = vmatprep.subr.mxu0 0.0
    %1365 = vmatpush1.xpose.msra.mxu0 0.0
    %1366 = vmatprep.subr.mxu0 0.0
    %1367 = vmatpush1.xpose.msra.mxu0 0.0
    %1368 = vmatprep.subr.mxu0 0.0
    %1369 = vmatpush1.xpose.msra.mxu0 0.0
    %1370 = vmatprep.subr.mxu0 0.0
    %1371 = vmatpush1.xpose.msra.mxu0 0.0
    %1372 = vmatprep.subr.mxu0 0.0
    %1373 = vmatpush1.xpose.msra.mxu0 0.0
    %1374 = vmatprep.subr.mxu0 0.0
    %1375 = vmatpush1.xpose.msra.mxu0 0.0
    %1376 = vmatprep.subr.mxu0 0.0
    %1377 = vmatpush1.xpose.msra.mxu0 0.0
    %1378 = vmatprep.subr.mxu0 0.0
    %1379 = vmatpush1.xpose.msra.mxu0 0.0
    %1380 = vmatprep.subr.mxu0 0.0
    %1381 = vmatpush1.xpose.msra.mxu0 0.0
    %1382 = vmatprep.subr.mxu0 0.0
    %1383 = vmatpush1.xpose.msra.mxu0 0.0
    %1384 = vmatprep.subr.mxu0 0.0
    %1385 = vmatpush1.xpose.msra.mxu0 0.0
    %1386 = vmatprep.subr.mxu0 0.0
    %1387 = vmatpush1.xpose.msra.mxu0 0.0
    %1388 = vmatprep.subr.mxu0 0.0
    %1389 = vmatpush1.xpose.msra.mxu0 0.0
    %1390 = vmatprep.subr.mxu0 0.0
    %1391 = vmatpush1.xpose.msra.mxu0 0.0
    %1392 = vmatprep.mubr.f32.mxu0 0.0
    %1393 = vmatmul.mubr.f32.gmra.mrb[0].mxu0 %v1324
    %v1394 = vpop.f32.mrb[0].mxu0
    %v1395 = vadd.f32 0.0, %v1394
    %v1396 = vpop.f32.mrb[0].mxu0
    %1397 = vdwg.mxu0
    %v1398 = vsel %vm337, %v1395, -inf
    %1399 = vmax.xlane.f32.xlu0 %v1398
    %v1400 = vpop.xlane.xlu0 %1399
    %v1401 = vsub.f32 %v1395, %v1400
    %v1402 = vmul.f32 %v1401, 1.442695
    %v1403 = vpow.pop %v1402
    %v1404 = vsel %vm337, %v1403, 0.0
    %1405 = vadd.xlane.f32.xlu0 %v1404
    %v1406 = vpop.xlane.xlu0 %1405
    %v1407 = vrcp.pop %v1406
    %v1408 = vmul.f32 %v1403, %v1407
    %1409 = vrot.lane.b32.xlu0 %v334, 112
    %v1410 = vpop.permute.xlu0 %1409
    %v1413 = vsel %vm337, %v1408, 0
    %1415 = vmatprep.subr.mxu0 0.0
    %1416 = vmatpush1.msra.mxu0 %v1410
    %1417 = vmatprep.subr.mxu0 0.0
    %1418 = vmatpush1.msra.mxu0 0.0
    %1419 = vmatprep.subr.mxu0 0.0
    %1420 = vmatpush1.msra.mxu0 0.0
    %1421 = vmatprep.subr.mxu0 0.0
    %1422 = vmatpush1.msra.mxu0 0.0
    %1423 = vmatprep.subr.mxu0 0.0
    %1424 = vmatpush1.msra.mxu0 0.0
    %1425 = vmatprep.subr.mxu0 0.0
    %1426 = vmatpush1.msra.mxu0 0.0
    %1427 = vmatprep.subr.mxu0 0.0
    %1428 = vmatpush1.msra.mxu0 0.0
    %1429 = vmatprep.subr.mxu0 0.0
    %1430 = vmatpush1.msra.mxu0 0.0
    %1431 = vmatprep.subr.mxu0 0.0
    %1432 = vmatpush1.msra.mxu0 0.0
    %1433 = vmatprep.subr.mxu0 0.0
    %1434 = vmatpush1.msra.mxu0 0.0
    %1435 = vmatprep.subr.mxu0 0.0
    %1436 = vmatpush1.msra.mxu0 0.0
    %1437 = vmatprep.subr.mxu0 0.0
    %1438 = vmatpush1.msra.mxu0 0.0
    %1439 = vmatprep.subr.mxu0 0.0
    %1440 = vmatpush1.msra.mxu0 0.0
    %1441 = vmatprep.subr.mxu0 0.0
    %1442 = vmatpush1.msra.mxu0 0.0
    %1443 = vmatprep.subr.mxu0 0.0
    %1444 = vmatpush1.msra.mxu0 0.0
    %1445 = vmatprep.subr.mxu0 0.0
    %1446 = vmatpush1.msra.mxu0 0.0
    %1447 = vmatprep.subr.mxu0 0.0
    %1448 = vmatpush1.msra.mxu0 0.0
    %1449 = vmatprep.subr.mxu0 0.0
    %1450 = vmatpush1.msra.mxu0 0.0
    %1451 = vmatprep.subr.mxu0 0.0
    %1452 = vmatpush1.msra.mxu0 0.0
    %1453 = vmatprep.subr.mxu0 0.0
    %1454 = vmatpush1.msra.mxu0 0.0
    %1455 = vmatprep.subr.mxu0 0.0
    %1456 = vmatpush1.msra.mxu0 0.0
    %1457 = vmatprep.subr.mxu0 0.0
    %1458 = vmatpush1.msra.mxu0 0.0
    %1459 = vmatprep.subr.mxu0 0.0
    %1460 = vmatpush1.msra.mxu0 0.0
    %1461 = vmatprep.subr.mxu0 0.0
    %1462 = vmatpush1.msra.mxu0 0.0
    %1463 = vmatprep.subr.mxu0 0.0
    %1464 = vmatpush1.msra.mxu0 0.0
    %1465 = vmatprep.subr.mxu0 0.0
    %1466 = vmatpush1.msra.mxu0 0.0
    %1467 = vmatprep.subr.mxu0 0.0
    %1468 = vmatpush1.msra.mxu0 0.0
    %1469 = vmatprep.subr.mxu0 0.0
    %1470 = vmatpush1.msra.mxu0 0.0
    %1471 = vmatprep.subr.mxu0 0.0
    %1472 = vmatpush1.msra.mxu0 0.0
    %1473 = vmatprep.subr.mxu0 0.0
    %1474 = vmatpush1.msra.mxu0 0.0
    %1475 = vmatprep.subr.mxu0 0.0
    %1476 = vmatpush1.msra.mxu0 0.0
    %1477 = vmatprep.subr.mxu0 0.0
    %1478 = vmatpush1.msra.mxu0 0.0
    %1479 = vmatprep.mubr.f32.mxu0 0.0
    %1480 = vmatmul.mubr.f32.gmra.mrb[0].mxu0 %v1413
    %v1481 = vpop.f32.mrb[0].mxu0
    %v1482 = vadd.f32 0.0, %v1481
    %v1483 = vpop.f32.mrb[0].mxu0
    %1484 = vdwg.mxu0
    %1485 = vrot.lane.b32.xlu0 %v178, 104
    %v1486 = vpop.permute.xlu0 %1485
    %1487 = vrot.lane.b32.xlu0 %v255, 104
    %v1488 = vpop.permute.xlu0 %1487
    %v1489 = vsel %vm337, %v1486, 0
    %v1491 = vsel %vm337, %v1488, 0
    %1493 = vmatprep.subr.mxu0 0.0
    %1494 = vmatpush1.xpose.msra.mxu0 %v1491
    %1495 = vmatprep.subr.mxu0 0.0
    %1496 = vmatpush1.xpose.msra.mxu0 0.0
    %1497 = vmatprep.subr.mxu0 0.0
    %1498 = vmatpush1.xpose.msra.mxu0 0.0
    %1499 = vmatprep.subr.mxu0 0.0
    %1500 = vmatpush1.xpose.msra.mxu0 0.0
    %1501 = vmatprep.subr.mxu0 0.0
    %1502 = vmatpush1.xpose.msra.mxu0 0.0
    %1503 = vmatprep.subr.mxu0 0.0
    %1504 = vmatpush1.xpose.msra.mxu0 0.0
    %1505 = vmatprep.subr.mxu0 0.0
    %1506 = vmatpush1.xpose.msra.mxu0 0.0
    %1507 = vmatprep.subr.mxu0 0.0
    %1508 = vmatpush1.xpose.msra.mxu0 0.0
    %1509 = vmatprep.subr.mxu0 0.0
    %1510 = vmatpush1.xpose.msra.mxu0 0.0
    %1511 = vmatprep.subr.mxu0 0.0
    %1512 = vmatpush1.xpose.msra.mxu0 0.0
    %1513 = vmatprep.subr.mxu0 0.0
    %1514 = vmatpush1.xpose.msra.mxu0 0.0
    %1515 = vmatprep.subr.mxu0 0.0
    %1516 = vmatpush1.xpose.msra.mxu0 0.0
    %1517 = vmatprep.subr.mxu0 0.0
    %1518 = vmatpush1.xpose.msra.mxu0 0.0
    %1519 = vmatprep.subr.mxu0 0.0
    %1520 = vmatpush1.xpose.msra.mxu0 0.0
    %1521 = vmatprep.subr.mxu0 0.0
    %1522 = vmatpush1.xpose.msra.mxu0 0.0
    %1523 = vmatprep.subr.mxu0 0.0
    %1524 = vmatpush1.xpose.msra.mxu0 0.0
    %1525 = vmatprep.subr.mxu0 0.0
    %1526 = vmatpush1.xpose.msra.mxu0 0.0
    %1527 = vmatprep.subr.mxu0 0.0
    %1528 = vmatpush1.xpose.msra.mxu0 0.0
    %1529 = vmatprep.subr.mxu0 0.0
    %1530 = vmatpush1.xpose.msra.mxu0 0.0
    %1531 = vmatprep.subr.mxu0 0.0
    %1532 = vmatpush1.xpose.msra.mxu0 0.0
    %1533 = vmatprep.subr.mxu0 0.0
    %1534 = vmatpush1.xpose.msra.mxu0 0.0
    %1535 = vmatprep.subr.mxu0 0.0
    %1536 = vmatpush1.xpose.msra.mxu0 0.0
    %1537 = vmatprep.subr.mxu0 0.0
    %1538 = vmatpush1.xpose.msra.mxu0 0.0
    %1539 = vmatprep.subr.mxu0 0.0
    %1540 = vmatpush1.xpose.msra.mxu0 0.0
    %1541 = vmatprep.subr.mxu0 0.0
    %1542 = vmatpush1.xpose.msra.mxu0 0.0
    %1543 = vmatprep.subr.mxu0 0.0
    %1544 = vmatpush1.xpose.msra.mxu0 0.0
    %1545 = vmatprep.subr.mxu0 0.0
    %1546 = vmatpush1.xpose.msra.mxu0 0.0
    %1547 = vmatprep.subr.mxu0 0.0
    %1548 = vmatpush1.xpose.msra.mxu0 0.0
    %1549 = vmatprep.subr.mxu0 0.0
    %1550 = vmatpush1.xpose.msra.mxu0 0.0
    %1551 = vmatprep.subr.mxu0 0.0
    %1552 = vmatpush1.xpose.msra.mxu0 0.0
    %1553 = vmatprep.subr.mxu0 0.0
    %1554 = vmatpush1.xpose.msra.mxu0 0.0
    %1555 = vmatprep.subr.mxu0 0.0
    %1556 = vmatpush1.xpose.msra.mxu0 0.0
    %1557 = vmatprep.mubr.f32.mxu0 0.0
    %1558 = vmatmul.mubr.f32.gmra.mrb[0].mxu0 %v1489
    %v1559 = vpop.f32.mrb[0].mxu0
    %v1560 = vadd.f32 0.0, %v1559
    %v1561 = vpop.f32.mrb[0].mxu0
    %1562 = vdwg.mxu0
    %v1563 = vsel %vm337, %v1560, -inf
    %1564 = vmax.xlane.f32.xlu0 %v1563
    %v1565 = vpop.xlane.xlu0 %1564
    %v1566 = vsub.f32 %v1560, %v1565
    %v1567 = vmul.f32 %v1566, 1.442695
    %v1568 = vpow.pop %v1567
    %v1569 = vsel %vm337, %v1568, 0.0
    %1570 = vadd.xlane.f32.xlu0 %v1569
    %v1571 = vpop.xlane.xlu0 %1570
    %v1572 = vrcp.pop %v1571
    %v1573 = vmul.f32 %v1568, %v1572
    %1574 = vrot.lane.b32.xlu0 %v334, 104
    %v1575 = vpop.permute.xlu0 %1574
    %v1578 = vsel %vm337, %v1573, 0
    %1580 = vmatprep.subr.mxu0 0.0
    %1581 = vmatpush1.msra.mxu0 %v1575
    %1582 = vmatprep.subr.mxu0 0.0
    %1583 = vmatpush1.msra.mxu0 0.0
    %1584 = vmatprep.subr.mxu0 0.0
    %1585 = vmatpush1.msra.mxu0 0.0
    %1586 = vmatprep.subr.mxu0 0.0
    %1587 = vmatpush1.msra.mxu0 0.0
    %1588 = vmatprep.subr.mxu0 0.0
    %1589 = vmatpush1.msra.mxu0 0.0
    %1590 = vmatprep.subr.mxu0 0.0
    %1591 = vmatpush1.msra.mxu0 0.0
    %1592 = vmatprep.subr.mxu0 0.0
    %1593 = vmatpush1.msra.mxu0 0.0
    %1594 = vmatprep.subr.mxu0 0.0
    %1595 = vmatpush1.msra.mxu0 0.0
    %1596 = vmatprep.subr.mxu0 0.0
    %1597 = vmatpush1.msra.mxu0 0.0
    %1598 = vmatprep.subr.mxu0 0.0
    %1599 = vmatpush1.msra.mxu0 0.0
    %1600 = vmatprep.subr.mxu0 0.0
    %1601 = vmatpush1.msra.mxu0 0.0
    %1602 = vmatprep.subr.mxu0 0.0
    %1603 = vmatpush1.msra.mxu0 0.0
    %1604 = vmatprep.subr.mxu0 0.0
    %1605 = vmatpush1.msra.mxu0 0.0
    %1606 = vmatprep.subr.mxu0 0.0
    %1607 = vmatpush1.msra.mxu0 0.0
    %1608 = vmatprep.subr.mxu0 0.0
    %1609 = vmatpush1.msra.mxu0 0.0
    %1610 = vmatprep.subr.mxu0 0.0
    %1611 = vmatpush1.msra.mxu0 0.0
    %1612 = vmatprep.subr.mxu0 0.0
    %1613 = vmatpush1.msra.mxu0 0.0
    %1614 = vmatprep.subr.mxu0 0.0
    %1615 = vmatpush1.msra.mxu0 0.0
    %1616 = vmatprep.subr.mxu0 0.0
    %1617 = vmatpush1.msra.mxu0 0.0
    %1618 = vmatprep.subr.mxu0 0.0
    %1619 = vmatpush1.msra.mxu0 0.0
    %1620 = vmatprep.subr.mxu0 0.0
    %1621 = vmatpush1.msra.mxu0 0.0
    %1622 = vmatprep.subr.mxu0 0.0
    %1623 = vmatpush1.msra.mxu0 0.0
    %1624 = vmatprep.subr.mxu0 0.0
    %1625 = vmatpush1.msra.mxu0 0.0
    %1626 = vmatprep.subr.mxu0 0.0
    %1627 = vmatpush1.msra.mxu0 0.0
    %1628 = vmatprep.subr.mxu0 0.0
    %1629 = vmatpush1.msra.mxu0 0.0
    %1630 = vmatprep.subr.mxu0 0.0
    %1631 = vmatpush1.msra.mxu0 0.0
    %1632 = vmatprep.subr.mxu0 0.0
    %1633 = vmatpush1.msra.mxu0 0.0
    %1634 = vmatprep.subr.mxu0 0.0
    %1635 = vmatpush1.msra.mxu0 0.0
    %1636 = vmatprep.subr.mxu0 0.0
    %1637 = vmatpush1.msra.mxu0 0.0
    %1638 = vmatprep.subr.mxu0 0.0
    %1639 = vmatpush1.msra.mxu0 0.0
    %1640 = vmatprep.subr.mxu0 0.0
    %1641 = vmatpush1.msra.mxu0 0.0
    %1642 = vmatprep.subr.mxu0 0.0
    %1643 = vmatpush1.msra.mxu0 0.0
    %1644 = vmatprep.mubr.f32.mxu0 0.0
    %1645 = vmatmul.mubr.f32.gmra.mrb[0].mxu0 %v1578
    %v1646 = vpop.f32.mrb[0].mxu0
    %v1647 = vadd.f32 0.0, %v1646
    %v1648 = vpop.f32.mrb[0].mxu0
    %1649 = vdwg.mxu0
    %v1651 = vrot.slane %v495, 1
    %1652 = vrot.lane.b32.xlu0 %v1651, 8
    %v1653 = vpop.permute.xlu0 %1652
    %v1655 = vrot.slane %v495, 2
    %1656 = vrot.lane.b32.xlu0 %v1655, 16
    %v1657 = vpop.permute.xlu0 %1656
    %v1659 = vrot.slane %v495, 3
    %1660 = vrot.lane.b32.xlu0 %v1659, 24
    %v1661 = vpop.permute.xlu0 %1660
    %v1663 = vsel %vm337, %v495, %v1653
    %vm1664 = vcmask 130048
    %v1665 = vsel %vm1664, %v1663, %v1657
    %vm1666 = vcmask 195584
    %v1667 = vsel %vm1666, %v1665, %v1661
    %v1669 = vrot.slane %v661, 1
    %1670 = vrot.lane.b32.xlu0 %v1669, 8
    %v1671 = vpop.permute.xlu0 %1670
    %v1673 = vrot.slane %v661, 2
    %1674 = vrot.lane.b32.xlu0 %v1673, 16
    %v1675 = vpop.permute.xlu0 %1674
    %v1677 = vrot.slane %v661, 3
    %1678 = vrot.lane.b32.xlu0 %v1677, 24
    %v1679 = vpop.permute.xlu0 %1678
    %v1681 = vsel %vm337, %v661, %v1671
    %v1682 = vsel %vm1664, %v1681, %v1675
    %v1683 = vsel %vm1666, %v1682, %v1679
    %v1685 = vrot.slane %v826, 1
    %1686 = vrot.lane.b32.xlu0 %v1685, 8
    %v1687 = vpop.permute.xlu0 %1686
    %v1689 = vrot.slane %v826, 2
    %1690 = vrot.lane.b32.xlu0 %v1689, 16
    %v1691 = vpop.permute.xlu0 %1690
    %v1693 = vrot.slane %v826, 3
    %1694 = vrot.lane.b32.xlu0 %v1693, 24
    %v1695 = vpop.permute.xlu0 %1694
    %v1697 = vsel %vm337, %v826, %v1687
    %v1698 = vsel %vm1664, %v1697, %v1691
    %v1699 = vsel %vm1666, %v1698, %v1695
    %v1701 = vrot.slane %v991, 1
    %1702 = vrot.lane.b32.xlu0 %v1701, 8
    %v1703 = vpop.permute.xlu0 %1702
    %v1705 = vrot.slane %v991, 2
    %1706 = vrot.lane.b32.xlu0 %v1705, 16
    %v1707 = vpop.permute.xlu0 %1706
    %v1709 = vrot.slane %v991, 3
    %1710 = vrot.lane.b32.xlu0 %v1709, 24
    %v1711 = vpop.permute.xlu0 %1710
    %v1713 = vsel %vm337, %v991, %v1703
    %v1714 = vsel %vm1664, %v1713, %v1707
    %v1715 = vsel %vm1666, %v1714, %v1711
    %v1717 = vrot.slane %v1151, 1
    %1718 = vrot.lane.b32.xlu0 %v1717, 8
    %v1719 = vpop.permute.xlu0 %1718
    %v1721 = vrot.slane %v1151, 2
    %1722 = vrot.lane.b32.xlu0 %v1721, 16
    %v1723 = vpop.permute.xlu0 %1722
    %v1725 = vrot.slane %v1151, 3
    %1726 = vrot.lane.b32.xlu0 %v1725, 24
    %v1727 = vpop.permute.xlu0 %1726
    %v1729 = vsel %vm337, %v1151, %v1719
    %v1730 = vsel %vm1664, %v1729, %v1723
    %v1731 = vsel %vm1666, %v1730, %v1727
    %v1733 = vrot.slane %v1317, 1
    %1734 = vrot.lane.b32.xlu0 %v1733, 8
    %v1735 = vpop.permute.xlu0 %1734
    %v1737 = vrot.slane %v1317, 2
    %1738 = vrot.lane.b32.xlu0 %v1737, 16
    %v1739 = vpop.permute.xlu0 %1738
    %v1741 = vrot.slane %v1317, 3
    %1742 = vrot.lane.b32.xlu0 %v1741, 24
    %v1743 = vpop.permute.xlu0 %1742
    %v1745 = vsel %vm337, %v1317, %v1735
    %v1746 = vsel %vm1664, %v1745, %v1739
    %v1747 = vsel %vm1666, %v1746, %v1743
    %v1749 = vrot.slane %v1482, 1
    %1750 = vrot.lane.b32.xlu0 %v1749, 8
    %v1751 = vpop.permute.xlu0 %1750
    %v1753 = vrot.slane %v1482, 2
    %1754 = vrot.lane.b32.xlu0 %v1753, 16
    %v1755 = vpop.permute.xlu0 %1754
    %v1757 = vrot.slane %v1482, 3
    %1758 = vrot.lane.b32.xlu0 %v1757, 24
    %v1759 = vpop.permute.xlu0 %1758
    %v1761 = vsel %vm337, %v1482, %v1751
    %v1762 = vsel %vm1664, %v1761, %v1755
    %v1763 = vsel %vm1666, %v1762, %v1759
    %v1765 = vrot.slane %v1647, 1
    %1766 = vrot.lane.b32.xlu0 %v1765, 8
    %v1767 = vpop.permute.xlu0 %1766
    %v1769 = vrot.slane %v1647, 2
    %1770 = vrot.lane.b32.xlu0 %v1769, 16
    %v1771 = vpop.permute.xlu0 %1770
    %v1773 = vrot.slane %v1647, 3
    %1774 = vrot.lane.b32.xlu0 %v1773, 24
    %v1775 = vpop.permute.xlu0 %1774
    %v1777 = vsel %vm337, %v1647, %v1767
    %v1778 = vsel %vm1664, %v1777, %v1771
    %v1779 = vsel %vm1666, %v1778, %v1775
    %v1781 = vrot.slane %v1667, 3
    %v1784 = vrot.slane %v1683, 6
    %v1786 = vrot.slane %v1683, 1
    %v1789 = vrot.slane %v1699, 4
    %v1791 = vrot.slane %v1699, 7
    %v1794 = vrot.slane %v1715, 2
    %v1796 = vrot.slane %v1715, 5
    %v1799 = vrot.slane %v1731, 3
    %v1802 = vrot.slane %v1747, 6
    %v1804 = vrot.slane %v1747, 1
    %v1807 = vrot.slane %v1763, 4
    %v1809 = vrot.slane %v1763, 7
    %v1812 = vrot.slane %v1779, 2
    %v1814 = vrot.slane %v1779, 5
    %vm1816 = vcmask 1040384
    %v1817 = vsel %vm1816, %v1667, %v1781
    %vm1818 = vcmask 1041408
    %v1819 = vsel %vm1818, %v1817, %v1784
    %vm1820 = vcmask 1042432
    %v1821 = vsel %vm1820, %v1819, %v1786
    %vm1822 = vcmask 1043456
    %v1823 = vsel %vm1822, %v1821, %v1789
    %vm1824 = vcmask 1044480
    %v1825 = vsel %vm1824, %v1823, %v1791
    %vm1826 = vcmask 1045504
    %v1827 = vsel %vm1826, %v1825, %v1794
    %vm1828 = vcmask 1046528
    %v1829 = vsel %vm1828, %v1827, %v1796
    %v1830 = vsel %vm1816, %v1731, %v1799
    %v1831 = vsel %vm1818, %v1830, %v1802
    %v1832 = vsel %vm1820, %v1831, %v1804
    %v1833 = vsel %vm1822, %v1832, %v1807
    %v1834 = vsel %vm1824, %v1833, %v1809
    %v1835 = vsel %vm1826, %v1834, %v1812
    %v1836 = vsel %vm1828, %v1835, %v1814
    %v1837 = vld [vmem:[#allocation5] sm:$0xff]
    %v1838 = vld [vmem:[#allocation5 + $0x8] sm:$0xff]
    %v1839 = vld [vmem:[#allocation5 + $0x10] sm:$0xff]
    %v1840 = vld [vmem:[#allocation5 + $0x18] sm:$0xff]
    %v1841 = vld [vmem:[%s5] sm:$0x1]
    %v1843 = vlaneseq
    %v1844 = vshrl.u32 %v1843, 7
    %v1845 = vsub.s32 0, %v1844
    %v1846 = vrot.slane %v1841, %v1845
    %v1849 = vsel %vm95, %v1829, 0
    %v1852 = vsel %vm95, %v1836, 0
    %1854 = vmatprep.subr.mxu0 0.0
    %1855 = vmatpush1.msra.mxu0 %v1837
    %1856 = vmatprep.subr.mxu0 0.0
    %1857 = vmatpush1.msra.mxu0 %v1838
    %1858 = vmatprep.subr.mxu0 0.0
    %1859 = vmatpush1.msra.mxu0 %v1839
    %1860 = vmatprep.subr.mxu0 0.0
    %1861 = vmatpush1.msra.mxu0 %v1840
    %1862 = vmatprep.subr.mxu0 0.0
    %1863 = vmatpush1.msra.mxu0 0.0
    %1864 = vmatprep.subr.mxu0 0.0
    %1865 = vmatpush1.msra.mxu0 0.0
    %1866 = vmatprep.subr.mxu0 0.0
    %1867 = vmatpush1.msra.mxu0 0.0
    %1868 = vmatprep.subr.mxu0 0.0
    %1869 = vmatpush1.msra.mxu0 0.0
    %1870 = vmatprep.subr.mxu0 0.0
    %1871 = vmatpush1.msra.mxu0 0.0
    %1872 = vmatprep.subr.mxu0 0.0
    %1873 = vmatpush1.msra.mxu0 0.0
    %1874 = vmatprep.subr.mxu0 0.0
    %1875 = vmatpush1.msra.mxu0 0.0
    %1876 = vmatprep.subr.mxu0 0.0
    %1877 = vmatpush1.msra.mxu0 0.0
    %1878 = vmatprep.subr.mxu0 0.0
    %1879 = vmatpush1.msra.mxu0 0.0
    %1880 = vmatprep.subr.mxu0 0.0
    %1881 = vmatpush1.msra.mxu0 0.0
    %1882 = vmatprep.subr.mxu0 0.0
    %1883 = vmatpush1.msra.mxu0 0.0
    %1884 = vmatprep.subr.mxu0 0.0
    %1885 = vmatpush1.msra.mxu0 0.0
    %1886 = vmatprep.subr.mxu0 0.0
    %1887 = vmatpush1.msra.mxu0 0.0
    %1888 = vmatprep.subr.mxu0 0.0
    %1889 = vmatpush1.msra.mxu0 0.0
    %1890 = vmatprep.subr.mxu0 0.0
    %1891 = vmatpush1.msra.mxu0 0.0
    %1892 = vmatprep.subr.mxu0 0.0
    %1893 = vmatpush1.msra.mxu0 0.0
    %1894 = vmatprep.subr.mxu0 0.0
    %1895 = vmatpush1.msra.mxu0 0.0
    %1896 = vmatprep.subr.mxu0 0.0
    %1897 = vmatpush1.msra.mxu0 0.0
    %1898 = vmatprep.subr.mxu0 0.0
    %1899 = vmatpush1.msra.mxu0 0.0
    %1900 = vmatprep.subr.mxu0 0.0
    %1901 = vmatpush1.msra.mxu0 0.0
    %1902 = vmatprep.subr.mxu0 0.0
    %1903 = vmatpush1.msra.mxu0 0.0
    %1904 = vmatprep.subr.mxu0 0.0
    %1905 = vmatpush1.msra.mxu0 0.0
    %1906 = vmatprep.subr.mxu0 0.0
    %1907 = vmatpush1.msra.mxu0 0.0
    %1908 = vmatprep.subr.mxu0 0.0
    %1909 = vmatpush1.msra.mxu0 0.0
    %1910 = vmatprep.subr.mxu0 0.0
    %1911 = vmatpush1.msra.mxu0 0.0
    %1912 = vmatprep.subr.mxu0 0.0
    %1913 = vmatpush1.msra.mxu0 0.0
    %1914 = vmatprep.subr.mxu0 0.0
    %1915 = vmatpush1.msra.mxu0 0.0
    %1916 = vmatprep.subr.mxu0 0.0
    %1917 = vmatpush1.msra.mxu0 0.0
    %1918 = vmatprep.mubr.f32.mxu0 0.0
    %1919 = vmatmul.mubr.f32.gmra.mrb[0].mxu0 %v1849
    %v1920 = vpop.f32.mrb[0].mxu0
    %v1921 = vadd.f32 %v1846, %v1920
    %v1922 = vpop.f32.mrb[0].mxu0
    %1923 = vmatprep.mubr.f32.mxu0 0.0
    %1924 = vmatmul.mubr.f32.gmra.mrb[0].mxu0 %v1852
    %v1925 = vpop.f32.mrb[0].mxu0
    %v1926 = vadd.f32 %v1846, %v1925
    %v1927 = vpop.f32.mrb[0].mxu0
    %1928 = vdwg.mxu0
    %v1929 = vadd.f32 %v89, %v1921
    %v1930 = vadd.f32 %v90, %v1926
    %v1931 = vsel %vm95, %v1929, 0.0
    %1932 = vadd.xlane.f32.xlu0 %v1931
    %v1933 = vpop.xlane.xlu0 %1932
    %v1934 = vsel %vm95, %v1930, 0.0
    %1935 = vadd.xlane.f32.xlu0 %v1934
    %v1936 = vpop.xlane.xlu0 %1935
    %v1937 = vrcp.pop 32.0
    %v1938 = vmul.f32 %v1933, %v1937
    %v1939 = vmul.f32 %v1936, %v1937
    %v1940 = vsub.f32 %v1929, %v1938
    %v1941 = vsub.f32 %v1930, %v1939
    %v1942 = vmul.f32 %v1940, %v1940
    %v1943 = vmul.f32 %v1941, %v1941
    %v1944 = vsel %vm95, %v1942, 0.0
    %1945 = vadd.xlane.f32.xlu0 %v1944
    %v1946 = vpop.xlane.xlu0 %1945
    %v1947 = vsel %vm95, %v1943, 0.0
    %1948 = vadd.xlane.f32.xlu0 %v1947
    %v1949 = vpop.xlane.xlu0 %1948
    %v1950 = vmul.f32 %v1946, %v1937
    %v1951 = vmul.f32 %v1949, %v1937
    %v1952 = vadd.f32 %v1950, 1e-05
    %v1953 = vadd.f32 %v1951, 1e-05
    %v1954 = vrsqrt.pop %v1952
    %v1955 = vrsqrt.pop %v1953
    %v1956 = vmul.f32 %v1940, %v1954
    %v1957 = vmul.f32 %v1941, %v1955
    %v1958 = vld [vmem:[%s6] sm:$0x1]
    %v1960 = vlaneseq
    %v1961 = vshrl.u32 %v1960, 7
    %v1962 = vsub.s32 0, %v1961
    %v1963 = vrot.slane %v1958, %v1962
    %v1965 = vmul.f32 %v1956, %v1963
    %v1966 = vmul.f32 %v1957, %v1963
    %v1967 = vld [vmem:[%s7] sm:$0x1]
    %v1969 = vlaneseq
    %v1970 = vshrl.u32 %v1969, 7
    %v1971 = vsub.s32 0, %v1970
    %v1972 = vrot.slane %v1967, %v1971
    %v1974 = vadd.f32 %v1965, %v1972
    %v1975 = vadd.f32 %v1966, %v1972
    %v1976 = vld [vmem:[#allocation7] sm:$0xff]
    %v1977 = vld [vmem:[#allocation7 + $0x8] sm:$0xff]
    %v1978 = vld [vmem:[#allocation7 + $0x10] sm:$0xff]
    %v1979 = vld [vmem:[#allocation7 + $0x18] sm:$0xff]
    %v1980 = vld [vmem:[%s9] sm:$0x1]
    %v1982 = vlaneseq
    %v1983 = vshrl.u32 %v1982, 7
    %v1984 = vsub.s32 0, %v1983
    %v1985 = vrot.slane %v1980, %v1984
    %v1988 = vsel %vm95, %v1974, 0
    %v1991 = vsel %vm95, %v1975, 0
    %1993 = vmatprep.subr.mxu0 0.0
    %1994 = vmatpush1.msra.mxu0 %v1976
    %1995 = vmatprep.subr.mxu0 0.0
    %1996 = vmatpush1.msra.mxu0 %v1977
    %1997 = vmatprep.subr.mxu0 0.0
    %1998 = vmatpush1.msra.mxu0 %v1978
    %1999 = vmatprep.subr.mxu0 0.0
    %2000 = vmatpush1.msra.mxu0 %v1979
    %2001 = vmatprep.subr.mxu0 0.0
    %2002 = vmatpush1.msra.mxu0 0.0
    %2003 = vmatprep.subr.mxu0 0.0
    %2004 = vmatpush1.msra.mxu0 0.0
    %2005 = vmatprep.subr.mxu0 0.0
    %2006 = vmatpush1.msra.mxu0 0.0
    %2007 = vmatprep.subr.mxu0 0.0
    %2008 = vmatpush1.msra.mxu0 0.0
    %2009 = vmatprep.subr.mxu0 0.0
    %2010 = vmatpush1.msra.mxu0 0.0
    %2011 = vmatprep.subr.mxu0 0.0
    %2012 = vmatpush1.msra.mxu0 0.0
    %2013 = vmatprep.subr.mxu0 0.0
    %2014 = vmatpush1.msra.mxu0 0.0
    %2015 = vmatprep.subr.mxu0 0.0
    %2016 = vmatpush1.msra.mxu0 0.0
    %2017 = vmatprep.subr.mxu0 0.0
    %2018 = vmatpush1.msra.mxu0 0.0
    %2019 = vmatprep.subr.mxu0 0.0
    %2020 = vmatpush1.msra.mxu0 0.0
    %2021 = vmatprep.subr.mxu0 0.0
    %2022 = vmatpush1.msra.mxu0 0.0
    %2023 = vmatprep.subr.mxu0 0.0
    %2024 = vmatpush1.msra.mxu0 0.0
    %2025 = vmatprep.subr.mxu0 0.0
    %2026 = vmatpush1.msra.mxu0 0.0
    %2027 = vmatprep.subr.mxu0 0.0
    %2028 = vmatpush1.msra.mxu0 0.0
    %2029 = vmatprep.subr.mxu0 0.0
    %2030 = vmatpush1.msra.mxu0 0.0
    %2031 = vmatprep.subr.mxu0 0.0
    %2032 = vmatpush1.msra.mxu0 0.0
    %2033 = vmatprep.subr.mxu0 0.0
    %2034 = vmatpush1.msra.mxu0 0.0
    %2035 = vmatprep.subr.mxu0 0.0
    %2036 = vmatpush1.msra.mxu0 0.0
    %2037 = vmatprep.subr.mxu0 0.0
    %2038 = vmatpush1.msra.mxu0 0.0
    %2039 = vmatprep.subr.mxu0 0.0
    %2040 = vmatpush1.msra.mxu0 0.0
    %2041 = vmatprep.subr.mxu0 0.0
    %2042 = vmatpush1.msra.mxu0 0.0
    %2043 = vmatprep.subr.mxu0 0.0
    %2044 = vmatpush1.msra.mxu0 0.0
    %2045 = vmatprep.subr.mxu0 0.0
    %2046 = vmatpush1.msra.mxu0 0.0
    %2047 = vmatprep.subr.mxu0 0.0
    %2048 = vmatpush1.msra.mxu0 0.0
    %2049 = vmatprep.subr.mxu0 0.0
    %2050 = vmatpush1.msra.mxu0 0.0
    %2051 = vmatprep.subr.mxu0 0.0
    %2052 = vmatpush1.msra.mxu0 0.0
    %2053 = vmatprep.subr.mxu0 0.0
    %2054 = vmatpush1.msra.mxu0 0.0
    %2055 = vmatprep.subr.mxu0 0.0
    %2056 = vmatpush1.msra.mxu0 0.0
    %2057 = vmatprep.mubr.f32.mxu0 0.0
    %2058 = vmatmul.mubr.f32.gmra.mrb[0].mxu0 %v1988
    %v2059 = vpop.f32.mrb[0].mxu0
    %v2060 = vadd.f32 %v1985, %v2059
    %v2061 = vpop.f32.mrb[0].mxu0
    %2062 = vmatprep.mubr.f32.mxu0 0.0
    %2063 = vmatmul.mubr.f32.gmra.mrb[0].mxu0 %v1991
    %v2064 = vpop.f32.mrb[0].mxu0
    %v2065 = vadd.f32 %v1985, %v2064
    %v2066 = vpop.f32.mrb[0].mxu0
    %2067 = vdwg.mxu0
    %v2068 = vmax.f32 %v2060, 0.0
    %v2069 = vmax.f32 %v2065, 0.0
    %v2070 = vld [vmem:[%s10] sm:$0xff]
    %v2071 = vld [vmem:[%s10 + $0x8] sm:$0xff]
    %v2072 = vld [vmem:[%s10 + $0x10] sm:$0xff]
    %v2073 = vld [vmem:[%s10 + $0x18] sm:$0xff]
    %v2074 = vld [vmem:[%s10 + $0x20] sm:$0xff]
    %v2075 = vld [vmem:[%s10 + $0x28] sm:$0xff]
    %v2076 = vld [vmem:[%s10 + $0x30] sm:$0xff]
    %v2077 = vld [vmem:[%s10 + $0x38] sm:$0xff]
    %v2078 = vld [vmem:[%s11] sm:$0x1]
    %v2080 = vlaneseq
    %v2081 = vshrl.u32 %v2080, 7
    %v2082 = vsub.s32 0, %v2081
    %v2083 = vrot.slane %v2078, %v2082
    %vm2085 = vcmask 523264
    %v2087 = vsel %vm2085, %v2068, 0
    %v2090 = vsel %vm2085, %v2069, 0
    %2092 = vmatprep.subr.mxu0 0.0
    %2093 = vmatpush1.msra.mxu0 %v2070
    %2094 = vmatprep.subr.mxu0 0.0
    %2095 = vmatpush1.msra.mxu0 %v2071
    %2096 = vmatprep.subr.mxu0 0.0
    %2097 = vmatpush1.msra.mxu0 %v2072
    %2098 = vmatprep.subr.mxu0 0.0
    %2099 = vmatpush1.msra.mxu0 %v2073
    %2100 = vmatprep.subr.mxu0 0.0
    %2101 = vmatpush1.msra.mxu0 %v2074
    %2102 = vmatprep.subr.mxu0 0.0
    %2103 = vmatpush1.msra.mxu0 %v2075
    %2104 = vmatprep.subr.mxu0 0.0
    %2105 = vmatpush1.msra.mxu0 %v2076
    %2106 = vmatprep.subr.mxu0 0.0
    %2107 = vmatpush1.msra.mxu0 %v2077
    %2108 = vmatprep.subr.mxu0 0.0
    %2109 = vmatpush1.msra.mxu0 0.0
    %2110 = vmatprep.subr.mxu0 0.0
    %2111 = vmatpush1.msra.mxu0 0.0
    %2112 = vmatprep.subr.mxu0 0.0
    %2113 = vmatpush1.msra.mxu0 0.0
    %2114 = vmatprep.subr.mxu0 0.0
    %2115 = vmatpush1.msra.mxu0 0.0
    %2116 = vmatprep.subr.mxu0 0.0
    %2117 = vmatpush1.msra.mxu0 0.0
    %2118 = vmatprep.subr.mxu0 0.0
    %2119 = vmatpush1.msra.mxu0 0.0
    %2120 = vmatprep.subr.mxu0 0.0
    %2121 = vmatpush1.msra.mxu0 0.0
    %2122 = vmatprep.subr.mxu0 0.0
    %2123 = vmatpush1.msra.mxu0 0.0
    %2124 = vmatprep.subr.mxu0 0.0
    %2125 = vmatpush1.msra.mxu0 0.0
    %2126 = vmatprep.subr.mxu0 0.0
    %2127 = vmatpush1.msra.mxu0 0.0
    %2128 = vmatprep.subr.mxu0 0.0
    %2129 = vmatpush1.msra.mxu0 0.0
    %2130 = vmatprep.subr.mxu0 0.0
    %2131 = vmatpush1.msra.mxu0 0.0
    %2132 = vmatprep.subr.mxu0 0.0
    %2133 = vmatpush1.msra.mxu0 0.0
    %2134 = vmatprep.subr.mxu0 0.0
    %2135 = vmatpush1.msra.mxu0 0.0
    %2136 = vmatprep.subr.mxu0 0.0
    %2137 = vmatpush1.msra.mxu0 0.0
    %2138 = vmatprep.subr.mxu0 0.0
    %2139 = vmatpush1.msra.mxu0 0.0
    %2140 = vmatprep.subr.mxu0 0.0
    %2141 = vmatpush1.msra.mxu0 0.0
    %2142 = vmatprep.subr.mxu0 0.0
    %2143 = vmatpush1.msra.mxu0 0.0
    %2144 = vmatprep.subr.mxu0 0.0
    %2145 = vmatpush1.msra.mxu0 0.0
    %2146 = vmatprep.subr.mxu0 0.0
    %2147 = vmatpush1.msra.mxu0 0.0
    %2148 = vmatprep.subr.mxu0 0.0
    %2149 = vmatpush1.msra.mxu0 0.0
    %2150 = vmatprep.subr.mxu0 0.0
    %2151 = vmatpush1.msra.mxu0 0.0
    %2152 = vmatprep.subr.mxu0 0.0
    %2153 = vmatpush1.msra.mxu0 0.0
    %2154 = vmatprep.subr.mxu0 0.0
    %2155 = vmatpush1.msra.mxu0 0.0
    %2156 = vmatprep.mubr.f32.mxu0 0.0
    %2157 = vmatmul.mubr.f32.gmra.mrb[0].mxu0 %v2087
    %v2158 = vpop.f32.mrb[0].mxu0
    %v2159 = vadd.f32 %v2083, %v2158
    %v2160 = vpop.f32.mrb[0].mxu0
    %2161 = vmatprep.mubr.f32.mxu0 0.0
    %2162 = vmatmul.mubr.f32.gmra.mrb[0].mxu0 %v2090
    %v2163 = vpop.f32.mrb[0].mxu0
    %v2164 = vadd.f32 %v2083, %v2163
    %v2165 = vpop.f32.mrb[0].mxu0
    %2166 = vdwg.mxu0
    %v2167 = vadd.f32 %v1974, %v2159
    %v2168 = vadd.f32 %v1975, %v2164
    %v2169 = vsel %vm95, %v2167, 0.0
    %2170 = vadd.xlane.f32.xlu0 %v2169
    %v2171 = vpop.xlane.xlu0 %2170
    %v2172 = vsel %vm95, %v2168, 0.0
    %2173 = vadd.xlane.f32.xlu0 %v2172
    %v2174 = vpop.xlane.xlu0 %2173
    %v2175 = vmul.f32 %v2171, %v1937
    %v2176 = vmul.f32 %v2174, %v1937
    %v2177 = vsub.f32 %v2167, %v2175
    %v2178 = vsub.f32 %v2168, %v2176
    %v2179 = vmul.f32 %v2177, %v2177
    %v2180 = vmul.f32 %v2178, %v2178
    %v2181 = vsel %vm95, %v2179, 0.0
    %2182 = vadd.xlane.f32.xlu0 %v2181
    %v2183 = vpop.xlane.xlu0 %2182
    %v2184 = vsel %vm95, %v2180, 0.0
    %2185 = vadd.xlane.f32.xlu0 %v2184
    %v2186 = vpop.xlane.xlu0 %2185
    %v2187 = vmul.f32 %v2183, %v1937
    %v2188 = vmul.f32 %v2186, %v1937
    %v2189 = vadd.f32 %v2187, 1e-05
    %v2190 = vadd.f32 %v2188, 1e-05
    %v2191 = vrsqrt.pop %v2189
    %v2192 = vrsqrt.pop %v2190
    %v2193 = vmul.f32 %v2177, %v2191
    %v2194 = vmul.f32 %v2178, %v2192
    %v2195 = vld [vmem:[%s12] sm:$0x1]
    %v2197 = vlaneseq
    %v2198 = vshrl.u32 %v2197, 7
    %v2199 = vsub.s32 0, %v2198
    %v2200 = vrot.slane %v2195, %v2199
    %v2202 = vmul.f32 %v2193, %v2200
    %v2203 = vmul.f32 %v2194, %v2200
    %v2204 = vld [vmem:[%s13] sm:$0x1]
    %v2206 = vlaneseq
    %v2207 = vshrl.u32 %v2206, 7
    %v2208 = vsub.s32 0, %v2207
    %v2209 = vrot.slane %v2204, %v2208
    %v2211 = vadd.f32 %v2202, %v2209
    %v2212 = vadd.f32 %v2203, %v2209
    %2213 = vst.msk [vmem:[#allocation8] sm:$0xff] %vm95, %v2211
    %2214 = vst.msk [vmem:[#allocation8 + $0x8] sm:$0xff] %vm95, %v2212
    // Predicated region
    $region70: #{tpu_custom_call.1} parent=1 // pred_check
      _
    $region71: #{tpu_custom_call.1} parent=1 // pred_check_branch
      %2216 = sbr.rel (0) target = $region73
    $region72: #{tpu_custom_call.1} parent=1 // pred_region
      %s2218 = ssub.s32 256, 256
      %2219 = vsyncadd [#allocation4], %s2218
      %s2220 = sshll.u32 [#allocation8], 4
      %s2221 = int_to_ptr.vmem [resolvable:$true] %s2220
      %2226 = dma.vmem_to_hbm [thread:$0]  %s2221, 256, %s14, [#allocation4], 128, 128, 8
    $region73: #{tpu_custom_call.1} parent=1 // pred_fallthru
      _
    // Predicated region
    $region74: #{tpu_custom_call.1} parent=1 // pred_check
      _
    $region75: #{tpu_custom_call.1} parent=1 // pred_check_branch
      %2228 = sbr.rel (0) target = $region77
    $region76: #{tpu_custom_call.1} parent=1 // pred_region
      %2229 = dma.done [#allocation4], 256
    $region77: #{tpu_custom_call.1} parent=1 // pred_fallthru
      _
    %2230 = vsyncpa [#allocation3], 1
    %2231 = vsyncpa [#allocation6], 1
    %2232 = vsyncpa [#allocation4], 1

</llo_original>
